<compile_context>
chip_gen: v6e
topology: v6e:2x2x1
jax: 0.10.0
libtpu: 0.0.40
codegen_flags: <defaults>
</compile_context>

<pallas_src>
import functools

import jax
import jax.numpy as jnp
import numpy as np
from jax import lax
from jax.experimental import pallas as pl
from jax.experimental.pallas import tpu as pltpu


# ------------------------------ fused kernel --------------------------------
def _dw5x5_lanes(v, wm_ref, b_ref, W, HW):
    """5x5 depthwise conv on (G, H*W) spatial-on-lanes data.

    wm_ref[t] is tap (kh, kw) pre-broadcast to (G, H*W) and pre-multiplied by the
    zero-padding validity mask, so every tap is just: lane roll + mul + add.
    """
    acc = v * wm_ref[12] + b_ref[...]            # center tap (dh = dw = 0): no roll
    t = 0
    for dh in range(-2, 3):                      # fully unrolled straight-line
        for dw in range(-2, 3):
            if dh != 0 or dw != 0:
                shift = (-(dh * W + dw)) % HW    # rolled[i] = v[i + dh*W + dw]
                acc = acc + pltpu.roll(v, shift, axis=1) * wm_ref[t]
            t += 1
    return acc


def _ghost_bottleneck_kernel(x_ref, w1_ref, b1_ref, wd1_ref, bd1_ref,
                             w2_ref, b2_ref, wd2_ref, bd2_ref, o_ref, *, W):
    HW = x_ref.shape[-1]
    G2 = w2_ref.shape[0]

    x = x_ref[...]                                          # (C1, HW)

    # ---- GhostConv1.cv1: 1x1 conv + folded BN + SiLU (MXU) ----
    a = jnp.dot(w1_ref[...], x, preferred_element_type=jnp.float32) + b1_ref[...]
    a = a * jax.nn.sigmoid(a)                               # (G1, HW)

    # ---- GhostConv1.cv2: 5x5 depthwise + folded BN + SiLU (XLU rolls + VPU) ----
    b = _dw5x5_lanes(a, wd1_ref, bd1_ref, W, HW)
    b = b * jax.nn.sigmoid(b)                               # (G1, HW)

    # ---- GhostConv2.cv1: 1x1 conv + folded BN (no act) ----
    # concat(a, b) on channels == free sublane stack -> one MXU matmul.
    y1 = jnp.concatenate([a, b], axis=0)                    # (2*G1, HW)
    c = jnp.dot(w2_ref[...], y1, preferred_element_type=jnp.float32) + b2_ref[...]

    # ---- GhostConv2.cv2: 5x5 depthwise + folded BN (no act) ----
    d = _dw5x5_lanes(c, wd2_ref, bd2_ref, W, HW)            # (G2, HW)

    # ---- concat(primary, cheap) + identity shortcut (s == 1) ----
    # Two sublane-aligned, lane-dense stores; no lane-axis concat, no masked vst.
    o_ref[0:G2, :] = (c + x[0:G2, :]).astype(o_ref.dtype)
    o_ref[G2:, :] = (d + x[G2:, :]).astype(o_ref.dtype)


# --------------------------- wrapper-side helpers ----------------------------
def _premask_dw_taps(w55g, H, W):
    """(5,5,G) depthwise taps -> (25, G, H*W): each tap broadcast over the
    flattened spatial positions and pre-multiplied by its zero-padding mask."""
    pos = np.arange(H * W)
    hh, ww = pos // W, pos % W
    taps = []
    for dh in range(-2, 3):
        for dw in range(-2, 3):
            valid = ((hh + dh >= 0) & (hh + dh < H) &
                     (ww + dw >= 0) & (ww + dw < W)).astype(np.float32)     # (HW,)
            taps.append(w55g[dh + 2, dw + 2, :][:, None] * valid[None, :])  # (G, HW)
    return jnp.stack(taps, axis=0)                                          # (25,G,HW)


def ghost_bottleneck_forward(params, x_nchw):
    """Matches GhostBottleneck.forward with s == 1: conv(x) + x.  NCHW in/out."""
    N, C1, H, W = x_nchw.shape
    HW = H * W
    G1 = params["pw1_w"].shape[0]
    G2 = params["pw2_w"].shape[0]
    C2 = 2 * G2
    assert C1 == C2, "s=1 GhostBottleneck identity shortcut requires c1 == c2"

    # NCHW -> (N, C, H*W): free reshape, no HBM transpose pass needed.
    x = x_nchw.reshape(N, C1, HW).astype(jnp.float32)

    wd1m = _premask_dw_taps(params["dw1_w"], H, W)          # (25, G1, HW)
    wd2m = _premask_dw_taps(params["dw2_w"], H, W)          # (25, G2, HW)
    b1 = params["pw1_b"].reshape(G1, 1)
    bd1 = params["dw1_b"].reshape(G1, 1)
    b2 = params["pw2_b"].reshape(G2, 1)
    bd2 = params["dw2_b"].reshape(G2, 1)

    kernel = functools.partial(_ghost_bottleneck_kernel, W=W)
    out = pl.pallas_call(
        kernel,
        out_shape=jax.ShapeDtypeStruct((N, C2, HW), jnp.float32),
        grid_spec=pltpu.PrefetchScalarGridSpec(
            num_scalar_prefetch=0,
            grid=(N,),
            in_specs=[
                pl.BlockSpec((None, C1, HW), lambda n: (n, 0, 0)),   # x image
                pl.BlockSpec((G1, C1), lambda n: (0, 0)),            # pw1 (G1,C1)
                pl.BlockSpec((G1, 1), lambda n: (0, 0)),
                pl.BlockSpec((25, G1, HW), lambda n: (0, 0, 0)),     # dw1 masked taps
                pl.BlockSpec((G1, 1), lambda n: (0, 0)),
                pl.BlockSpec((G2, 2 * G1), lambda n: (0, 0)),        # pw2 (G2,C_)
                pl.BlockSpec((G2, 1), lambda n: (0, 0)),
                pl.BlockSpec((25, G2, HW), lambda n: (0, 0, 0)),     # dw2 masked taps
                pl.BlockSpec((G2, 1), lambda n: (0, 0)),
            ],
            out_specs=pl.BlockSpec((None, C2, HW), lambda n: (n, 0, 0)),
        ),
        compiler_params=pltpu.CompilerParams(dimension_semantics=("parallel",)),
    )(x, params["pw1_w"], b1, wd1m, bd1, params["pw2_w"], b2, wd2m, bd2)
    return out.reshape(N, C2, H, W)


# --------------------------- parameter creation ------------------------------
def _fold_bn(w, out_axis, coeff):
    """Fold a synthetic inference BatchNorm into conv weight (scale) + bias."""
    eps = 1e-3
    cout = w.shape[out_axis]
    r = jnp.arange(cout, dtype=jnp.float32)
    gamma = 1.0 + 0.05 * coeff * r
    beta = 0.02 * coeff * r
    mu = 0.01 * coeff * r
    var = 1.0 + 0.03 * r
    s = gamma / jnp.sqrt(var + eps)
    shape = [1] * w.ndim
    shape[out_axis] = cout
    return w * s.reshape(shape), beta - mu * s              # bias shape (cout,)


def init_ghost_bottleneck_params(key, c1, c2):
    """Deterministic synthetic params; BN folded into conv weights / biases."""
    c_ = c2 // 2          # GhostConv1 output width
    g1 = c_ // 2          # GhostConv1 primary (cv1) width
    g2 = c2 // 2          # GhostConv2 primary width
    k1, k2, k3, k4 = jax.random.split(key, 4)
    pw1_w, pw1_b = _fold_bn(jax.random.normal(k1, (g1, c1), jnp.float32) * 0.2, 0, 1.0)
    dw1_w, dw1_b = _fold_bn(jax.random.normal(k2, (5, 5, g1), jnp.float32) * 0.2, 2, -0.5)
    pw2_w, pw2_b = _fold_bn(jax.random.normal(k3, (g2, c_), jnp.float32) * 0.2, 0, 0.7)
    dw2_w, dw2_b = _fold_bn(jax.random.normal(k4, (5, 5, g2), jnp.float32) * 0.2, 2, -0.3)
    return dict(pw1_w=pw1_w, pw1_b=pw1_b, dw1_w=dw1_w, dw1_b=dw1_b,
                pw2_w=pw2_w, pw2_b=pw2_b, dw2_w=dw2_w, dw2_b=dw2_b)


# ---------------------------- pure-JAX reference -----------------------------
def ghost_bottleneck_ref(params, x_nchw):
    x = x_nchw.astype(jnp.float32)

    def pw(v, w, b):                                        # w: (Cout, Cin)
        return jnp.einsum("oc,nchw->nohw", w, v) + b.reshape(1, -1, 1, 1)

    def dw5(v, w, b):                                       # w: (5,5,G)
        G = v.shape[1]
        y = lax.conv_general_dilated(
            v, w.reshape(5, 5, 1, G), window_strides=(1, 1),
            padding=[(2, 2), (2, 2)],
            dimension_numbers=("NCHW", "HWIO", "NCHW"),
            feature_group_count=G)
        return y + b.reshape(1, -1, 1, 1)

    a = pw(x, params["pw1_w"], params["pw1_b"]); a = a * jax.nn.sigmoid(a)
    b = dw5(a, params["dw1_w"], params["dw1_b"]); b = b * jax.nn.sigmoid(b)
    y1 = jnp.concatenate([a, b], axis=1)
    c = pw(y1, params["pw2_w"], params["pw2_b"])
    d = dw5(c, params["dw2_w"], params["dw2_b"])
    return jnp.concatenate([c, d], axis=1) + x


if __name__ == "__main__":
    c1 = c2 = 32                       # GhostBottleneck(c1=32, c2=32, k=3, s=1)
    N, H, W = 2, 16, 16
    key = jax.random.PRNGKey(0)
    kp, kx = jax.random.split(key)
    params = init_ghost_bottleneck_params(kp, c1, c2)
    x = jax.random.normal(kx, (N, c1, H, W), jnp.float32)   # NCHW, like PyTorch

    y = ghost_bottleneck_forward(params, x)
    y = jax.block_until_ready(y)
    assert y.shape == (N, c2, H, W), y.shape

    y_ref = ghost_bottleneck_ref(params, x)
    np.testing.assert_allclose(np.asarray(y), np.asarray(y_ref), atol=1e-4, rtol=1e-4)
    print("KERNEL_OK")
</pallas_src>

<mosaic_0001>
module attributes {stable_mosaic.version = 11 : i64} {
  func.func @_ghost_bottleneck_kernel(%arg0: i32, %arg1: memref<1x32x256xf32, #tpu.memory_space<vmem>>, %arg2: memref<8x32xf32, #tpu.memory_space<vmem>>, %arg3: memref<8x1xf32, #tpu.memory_space<vmem>>, %arg4: memref<25x8x256xf32, #tpu.memory_space<vmem>>, %arg5: memref<8x1xf32, #tpu.memory_space<vmem>>, %arg6: memref<16x16xf32, #tpu.memory_space<vmem>>, %arg7: memref<16x1xf32, #tpu.memory_space<vmem>>, %arg8: memref<25x16x256xf32, #tpu.memory_space<vmem>>, %arg9: memref<16x1xf32, #tpu.memory_space<vmem>>, %arg10: memref<1x32x256xf32, #tpu.memory_space<vmem>>) attributes {dimension_semantics = [#tpu.dimension_semantics<parallel>], iteration_bounds = array<i64: 2>, scalar_prefetch = 0 : i64, scratch_operands = 0 : i64, tpu.core_type = #tpu.core_type<tc>, window_params = [{transform_indices = @transform_0, window_bounds = array<i64: 1, 32, 256>}, {pipeline_mode = #tpu.pipeline_mode<synchronous>, transform_indices = @transform_1, window_bounds = array<i64: 8, 32>}, {pipeline_mode = #tpu.pipeline_mode<synchronous>, transform_indices = @transform_2, window_bounds = array<i64: 8, 1>}, {pipeline_mode = #tpu.pipeline_mode<synchronous>, transform_indices = @transform_3, window_bounds = array<i64: 25, 8, 256>}, {pipeline_mode = #tpu.pipeline_mode<synchronous>, transform_indices = @transform_4, window_bounds = array<i64: 8, 1>}, {pipeline_mode = #tpu.pipeline_mode<synchronous>, transform_indices = @transform_5, window_bounds = array<i64: 16, 16>}, {pipeline_mode = #tpu.pipeline_mode<synchronous>, transform_indices = @transform_6, window_bounds = array<i64: 16, 1>}, {pipeline_mode = #tpu.pipeline_mode<synchronous>, transform_indices = @transform_7, window_bounds = array<i64: 25, 16, 256>}, {pipeline_mode = #tpu.pipeline_mode<synchronous>, transform_indices = @transform_8, window_bounds = array<i64: 16, 1>}, {transform_indices = @transform_9, window_bounds = array<i64: 1, 32, 256>}]} {
    %c0 = arith.constant 0 : index
    %c0_0 = arith.constant 0 : index
    %c0_1 = arith.constant 0 : index
    %0 = vector.load %arg1[%c0, %c0_0, %c0_1] : memref<1x32x256xf32, #tpu.memory_space<vmem>>, vector<1x32x256xf32>
    %1 = vector.shape_cast %0 : vector<1x32x256xf32> to vector<32x256xf32>
    %c0_2 = arith.constant 0 : index
    %c0_3 = arith.constant 0 : index
    %2 = vector.load %arg2[%c0_2, %c0_3] : memref<8x32xf32, #tpu.memory_space<vmem>>, vector<8x32xf32>
    %cst = arith.constant dense<0.000000e+00> : vector<8x256xf32>
    %3 = tpu.matmul %2, %1, %cst {dimension_numbers = #tpu.dot_dimension_numbers<[1], [0], [0], [1], [0, 0, 1, 1], [], []>} : vector<8x32xf32>, vector<32x256xf32>, vector<8x256xf32> -> vector<8x256xf32>
    %c0_4 = arith.constant 0 : index
    %c0_5 = arith.constant 0 : index
    %4 = vector.load %arg3[%c0_4, %c0_5] : memref<8x1xf32, #tpu.memory_space<vmem>>, vector<8x1xf32>
    %5 = vector.broadcast %4 : vector<8x1xf32> to vector<8x256xf32>
    %6 = arith.addf %3, %5 : vector<8x256xf32>
    %7 = arith.negf %6 : vector<8x256xf32>
    %8 = math.exp %7 : vector<8x256xf32>
    %cst_6 = arith.constant 1.000000e+00 : f32
    %9 = vector.broadcast %cst_6 : f32 to vector<8x256xf32>
    %10 = arith.addf %9, %8 : vector<8x256xf32>
    %11 = arith.divf %9, %10 : vector<8x256xf32>
    %12 = arith.mulf %6, %11 : vector<8x256xf32>
    %c12 = arith.constant 12 : index
    %c0_7 = arith.constant 0 : index
    %c0_8 = arith.constant 0 : index
    %13 = vector.load %arg4[%c12, %c0_7, %c0_8] : memref<25x8x256xf32, #tpu.memory_space<vmem>>, vector<1x8x256xf32>
    %14 = vector.shape_cast %13 : vector<1x8x256xf32> to vector<8x256xf32>
    %15 = arith.mulf %12, %14 : vector<8x256xf32>
    %c0_9 = arith.constant 0 : index
    %c0_10 = arith.constant 0 : index
    %16 = vector.load %arg5[%c0_9, %c0_10] : memref<8x1xf32, #tpu.memory_space<vmem>>, vector<8x1xf32>
    %17 = vector.broadcast %16 : vector<8x1xf32> to vector<8x256xf32>
    %18 = arith.addf %15, %17 : vector<8x256xf32>
    %c34_i32 = arith.constant 34 : i32
    %19 = tpu.dynamic_rotate %12 by %c34_i32 dim 1 : vector<8x256xf32>, i32 -> vector<8x256xf32>
    %c0_11 = arith.constant 0 : index
    %c0_12 = arith.constant 0 : index
    %c0_13 = arith.constant 0 : index
    %20 = vector.load %arg4[%c0_11, %c0_12, %c0_13] : memref<25x8x256xf32, #tpu.memory_space<vmem>>, vector<1x8x256xf32>
    %21 = vector.shape_cast %20 : vector<1x8x256xf32> to vector<8x256xf32>
    %22 = arith.mulf %19, %21 : vector<8x256xf32>
    %23 = arith.addf %18, %22 : vector<8x256xf32>
    %c33_i32 = arith.constant 33 : i32
    %24 = tpu.dynamic_rotate %12 by %c33_i32 dim 1 : vector<8x256xf32>, i32 -> vector<8x256xf32>
    %c1 = arith.constant 1 : index
    %c0_14 = arith.constant 0 : index
    %c0_15 = arith.constant 0 : index
    %25 = vector.load %arg4[%c1, %c0_14, %c0_15] : memref<25x8x256xf32, #tpu.memory_space<vmem>>, vector<1x8x256xf32>
    %26 = vector.shape_cast %25 : vector<1x8x256xf32> to vector<8x256xf32>
    %27 = arith.mulf %24, %26 : vector<8x256xf32>
    %28 = arith.addf %23, %27 : vector<8x256xf32>
    %c32_i32 = arith.constant 32 : i32
    %29 = tpu.dynamic_rotate %12 by %c32_i32 dim 1 : vector<8x256xf32>, i32 -> vector<8x256xf32>
    %c2 = arith.constant 2 : index
    %c0_16 = arith.constant 0 : index
    %c0_17 = arith.constant 0 : index
    %30 = vector.load %arg4[%c2, %c0_16, %c0_17] : memref<25x8x256xf32, #tpu.memory_space<vmem>>, vector<1x8x256xf32>
    %31 = vector.shape_cast %30 : vector<1x8x256xf32> to vector<8x256xf32>
    %32 = arith.mulf %29, %31 : vector<8x256xf32>
    %33 = arith.addf %28, %32 : vector<8x256xf32>
    %c31_i32 = arith.constant 31 : i32
    %34 = tpu.dynamic_rotate %12 by %c31_i32 dim 1 : vector<8x256xf32>, i32 -> vector<8x256xf32>
    %c3 = arith.constant 3 : index
    %c0_18 = arith.constant 0 : index
    %c0_19 = arith.constant 0 : index
    %35 = vector.load %arg4[%c3, %c0_18, %c0_19] : memref<25x8x256xf32, #tpu.memory_space<vmem>>, vector<1x8x256xf32>
    %36 = vector.shape_cast %35 : vector<1x8x256xf32> to vector<8x256xf32>
    %37 = arith.mulf %34, %36 : vector<8x256xf32>
    %38 = arith.addf %33, %37 : vector<8x256xf32>
    %c30_i32 = arith.constant 30 : i32
    %39 = tpu.dynamic_rotate %12 by %c30_i32 dim 1 : vector<8x256xf32>, i32 -> vector<8x256xf32>
    %c4 = arith.constant 4 : index
    %c0_20 = arith.constant 0 : index
    %c0_21 = arith.constant 0 : index
    %40 = vector.load %arg4[%c4, %c0_20, %c0_21] : memref<25x8x256xf32, #tpu.memory_space<vmem>>, vector<1x8x256xf32>
    %41 = vector.shape_cast %40 : vector<1x8x256xf32> to vector<8x256xf32>
    %42 = arith.mulf %39, %41 : vector<8x256xf32>
    %43 = arith.addf %38, %42 : vector<8x256xf32>
    %c18_i32 = arith.constant 18 : i32
    %44 = tpu.dynamic_rotate %12 by %c18_i32 dim 1 : vector<8x256xf32>, i32 -> vector<8x256xf32>
    %c5 = arith.constant 5 : index
    %c0_22 = arith.constant 0 : index
    %c0_23 = arith.constant 0 : index
    %45 = vector.load %arg4[%c5, %c0_22, %c0_23] : memref<25x8x256xf32, #tpu.memory_space<vmem>>, vector<1x8x256xf32>
    %46 = vector.shape_cast %45 : vector<1x8x256xf32> to vector<8x256xf32>
    %47 = arith.mulf %44, %46 : vector<8x256xf32>
    %48 = arith.addf %43, %47 : vector<8x256xf32>
    %c17_i32 = arith.constant 17 : i32
    %49 = tpu.dynamic_rotate %12 by %c17_i32 dim 1 : vector<8x256xf32>, i32 -> vector<8x256xf32>
    %c6 = arith.constant 6 : index
    %c0_24 = arith.constant 0 : index
    %c0_25 = arith.constant 0 : index
    %50 = vector.load %arg4[%c6, %c0_24, %c0_25] : memref<25x8x256xf32, #tpu.memory_space<vmem>>, vector<1x8x256xf32>
    %51 = vector.shape_cast %50 : vector<1x8x256xf32> to vector<8x256xf32>
    %52 = arith.mulf %49, %51 : vector<8x256xf32>
    %53 = arith.addf %48, %52 : vector<8x256xf32>
    %c16_i32 = arith.constant 16 : i32
    %54 = tpu.dynamic_rotate %12 by %c16_i32 dim 1 : vector<8x256xf32>, i32 -> vector<8x256xf32>
    %c7 = arith.constant 7 : index
    %c0_26 = arith.constant 0 : index
    %c0_27 = arith.constant 0 : index
    %55 = vector.load %arg4[%c7, %c0_26, %c0_27] : memref<25x8x256xf32, #tpu.memory_space<vmem>>, vector<1x8x256xf32>
    %56 = vector.shape_cast %55 : vector<1x8x256xf32> to vector<8x256xf32>
    %57 = arith.mulf %54, %56 : vector<8x256xf32>
    %58 = arith.addf %53, %57 : vector<8x256xf32>
    %c15_i32 = arith.constant 15 : i32
    %59 = tpu.dynamic_rotate %12 by %c15_i32 dim 1 : vector<8x256xf32>, i32 -> vector<8x256xf32>
    %c8 = arith.constant 8 : index
    %c0_28 = arith.constant 0 : index
    %c0_29 = arith.constant 0 : index
    %60 = vector.load %arg4[%c8, %c0_28, %c0_29] : memref<25x8x256xf32, #tpu.memory_space<vmem>>, vector<1x8x256xf32>
    %61 = vector.shape_cast %60 : vector<1x8x256xf32> to vector<8x256xf32>
    %62 = arith.mulf %59, %61 : vector<8x256xf32>
    %63 = arith.addf %58, %62 : vector<8x256xf32>
    %c14_i32 = arith.constant 14 : i32
    %64 = tpu.dynamic_rotate %12 by %c14_i32 dim 1 : vector<8x256xf32>, i32 -> vector<8x256xf32>
    %c9 = arith.constant 9 : index
    %c0_30 = arith.constant 0 : index
    %c0_31 = arith.constant 0 : index
    %65 = vector.load %arg4[%c9, %c0_30, %c0_31] : memref<25x8x256xf32, #tpu.memory_space<vmem>>, vector<1x8x256xf32>
    %66 = vector.shape_cast %65 : vector<1x8x256xf32> to vector<8x256xf32>
    %67 = arith.mulf %64, %66 : vector<8x256xf32>
    %68 = arith.addf %63, %67 : vector<8x256xf32>
    %c2_i32 = arith.constant 2 : i32
    %69 = tpu.dynamic_rotate %12 by %c2_i32 dim 1 : vector<8x256xf32>, i32 -> vector<8x256xf32>
    %c10 = arith.constant 10 : index
    %c0_32 = arith.constant 0 : index
    %c0_33 = arith.constant 0 : index
    %70 = vector.load %arg4[%c10, %c0_32, %c0_33] : memref<25x8x256xf32, #tpu.memory_space<vmem>>, vector<1x8x256xf32>
    %71 = vector.shape_cast %70 : vector<1x8x256xf32> to vector<8x256xf32>
    %72 = arith.mulf %69, %71 : vector<8x256xf32>
    %73 = arith.addf %68, %72 : vector<8x256xf32>
    %c1_i32 = arith.constant 1 : i32
    %74 = tpu.dynamic_rotate %12 by %c1_i32 dim 1 : vector<8x256xf32>, i32 -> vector<8x256xf32>
    %c11 = arith.constant 11 : index
    %c0_34 = arith.constant 0 : index
    %c0_35 = arith.constant 0 : index
    %75 = vector.load %arg4[%c11, %c0_34, %c0_35] : memref<25x8x256xf32, #tpu.memory_space<vmem>>, vector<1x8x256xf32>
    %76 = vector.shape_cast %75 : vector<1x8x256xf32> to vector<8x256xf32>
    %77 = arith.mulf %74, %76 : vector<8x256xf32>
    %78 = arith.addf %73, %77 : vector<8x256xf32>
    %c255_i32 = arith.constant 255 : i32
    %79 = tpu.dynamic_rotate %12 by %c255_i32 dim 1 : vector<8x256xf32>, i32 -> vector<8x256xf32>
    %c13 = arith.constant 13 : index
    %c0_36 = arith.constant 0 : index
    %c0_37 = arith.constant 0 : index
    %80 = vector.load %arg4[%c13, %c0_36, %c0_37] : memref<25x8x256xf32, #tpu.memory_space<vmem>>, vector<1x8x256xf32>
    %81 = vector.shape_cast %80 : vector<1x8x256xf32> to vector<8x256xf32>
    %82 = arith.mulf %79, %81 : vector<8x256xf32>
    %83 = arith.addf %78, %82 : vector<8x256xf32>
    %c254_i32 = arith.constant 254 : i32
    %84 = tpu.dynamic_rotate %12 by %c254_i32 dim 1 : vector<8x256xf32>, i32 -> vector<8x256xf32>
    %c14 = arith.constant 14 : index
    %c0_38 = arith.constant 0 : index
    %c0_39 = arith.constant 0 : index
    %85 = vector.load %arg4[%c14, %c0_38, %c0_39] : memref<25x8x256xf32, #tpu.memory_space<vmem>>, vector<1x8x256xf32>
    %86 = vector.shape_cast %85 : vector<1x8x256xf32> to vector<8x256xf32>
    %87 = arith.mulf %84, %86 : vector<8x256xf32>
    %88 = arith.addf %83, %87 : vector<8x256xf32>
    %c242_i32 = arith.constant 242 : i32
    %89 = tpu.dynamic_rotate %12 by %c242_i32 dim 1 : vector<8x256xf32>, i32 -> vector<8x256xf32>
    %c15 = arith.constant 15 : index
    %c0_40 = arith.constant 0 : index
    %c0_41 = arith.constant 0 : index
    %90 = vector.load %arg4[%c15, %c0_40, %c0_41] : memref<25x8x256xf32, #tpu.memory_space<vmem>>, vector<1x8x256xf32>
    %91 = vector.shape_cast %90 : vector<1x8x256xf32> to vector<8x256xf32>
    %92 = arith.mulf %89, %91 : vector<8x256xf32>
    %93 = arith.addf %88, %92 : vector<8x256xf32>
    %c241_i32 = arith.constant 241 : i32
    %94 = tpu.dynamic_rotate %12 by %c241_i32 dim 1 : vector<8x256xf32>, i32 -> vector<8x256xf32>
    %c16 = arith.constant 16 : index
    %c0_42 = arith.constant 0 : index
    %c0_43 = arith.constant 0 : index
    %95 = vector.load %arg4[%c16, %c0_42, %c0_43] : memref<25x8x256xf32, #tpu.memory_space<vmem>>, vector<1x8x256xf32>
    %96 = vector.shape_cast %95 : vector<1x8x256xf32> to vector<8x256xf32>
    %97 = arith.mulf %94, %96 : vector<8x256xf32>
    %98 = arith.addf %93, %97 : vector<8x256xf32>
    %c240_i32 = arith.constant 240 : i32
    %99 = tpu.dynamic_rotate %12 by %c240_i32 dim 1 : vector<8x256xf32>, i32 -> vector<8x256xf32>
    %c17 = arith.constant 17 : index
    %c0_44 = arith.constant 0 : index
    %c0_45 = arith.constant 0 : index
    %100 = vector.load %arg4[%c17, %c0_44, %c0_45] : memref<25x8x256xf32, #tpu.memory_space<vmem>>, vector<1x8x256xf32>
    %101 = vector.shape_cast %100 : vector<1x8x256xf32> to vector<8x256xf32>
    %102 = arith.mulf %99, %101 : vector<8x256xf32>
    %103 = arith.addf %98, %102 : vector<8x256xf32>
    %c239_i32 = arith.constant 239 : i32
    %104 = tpu.dynamic_rotate %12 by %c239_i32 dim 1 : vector<8x256xf32>, i32 -> vector<8x256xf32>
    %c18 = arith.constant 18 : index
    %c0_46 = arith.constant 0 : index
    %c0_47 = arith.constant 0 : index
    %105 = vector.load %arg4[%c18, %c0_46, %c0_47] : memref<25x8x256xf32, #tpu.memory_space<vmem>>, vector<1x8x256xf32>
    %106 = vector.shape_cast %105 : vector<1x8x256xf32> to vector<8x256xf32>
    %107 = arith.mulf %104, %106 : vector<8x256xf32>
    %108 = arith.addf %103, %107 : vector<8x256xf32>
    %c238_i32 = arith.constant 238 : i32
    %109 = tpu.dynamic_rotate %12 by %c238_i32 dim 1 : vector<8x256xf32>, i32 -> vector<8x256xf32>
    %c19 = arith.constant 19 : index
    %c0_48 = arith.constant 0 : index
    %c0_49 = arith.constant 0 : index
    %110 = vector.load %arg4[%c19, %c0_48, %c0_49] : memref<25x8x256xf32, #tpu.memory_space<vmem>>, vector<1x8x256xf32>
    %111 = vector.shape_cast %110 : vector<1x8x256xf32> to vector<8x256xf32>
    %112 = arith.mulf %109, %111 : vector<8x256xf32>
    %113 = arith.addf %108, %112 : vector<8x256xf32>
    %c226_i32 = arith.constant 226 : i32
    %114 = tpu.dynamic_rotate %12 by %c226_i32 dim 1 : vector<8x256xf32>, i32 -> vector<8x256xf32>
    %c20 = arith.constant 20 : index
    %c0_50 = arith.constant 0 : index
    %c0_51 = arith.constant 0 : index
    %115 = vector.load %arg4[%c20, %c0_50, %c0_51] : memref<25x8x256xf32, #tpu.memory_space<vmem>>, vector<1x8x256xf32>
    %116 = vector.shape_cast %115 : vector<1x8x256xf32> to vector<8x256xf32>
    %117 = arith.mulf %114, %116 : vector<8x256xf32>
    %118 = arith.addf %113, %117 : vector<8x256xf32>
    %c225_i32 = arith.constant 225 : i32
    %119 = tpu.dynamic_rotate %12 by %c225_i32 dim 1 : vector<8x256xf32>, i32 -> vector<8x256xf32>
    %c21 = arith.constant 21 : index
    %c0_52 = arith.constant 0 : index
    %c0_53 = arith.constant 0 : index
    %120 = vector.load %arg4[%c21, %c0_52, %c0_53] : memref<25x8x256xf32, #tpu.memory_space<vmem>>, vector<1x8x256xf32>
    %121 = vector.shape_cast %120 : vector<1x8x256xf32> to vector<8x256xf32>
    %122 = arith.mulf %119, %121 : vector<8x256xf32>
    %123 = arith.addf %118, %122 : vector<8x256xf32>
    %c224_i32 = arith.constant 224 : i32
    %124 = tpu.dynamic_rotate %12 by %c224_i32 dim 1 : vector<8x256xf32>, i32 -> vector<8x256xf32>
    %c22 = arith.constant 22 : index
    %c0_54 = arith.constant 0 : index
    %c0_55 = arith.constant 0 : index
    %125 = vector.load %arg4[%c22, %c0_54, %c0_55] : memref<25x8x256xf32, #tpu.memory_space<vmem>>, vector<1x8x256xf32>
    %126 = vector.shape_cast %125 : vector<1x8x256xf32> to vector<8x256xf32>
    %127 = arith.mulf %124, %126 : vector<8x256xf32>
    %128 = arith.addf %123, %127 : vector<8x256xf32>
    %c223_i32 = arith.constant 223 : i32
    %129 = tpu.dynamic_rotate %12 by %c223_i32 dim 1 : vector<8x256xf32>, i32 -> vector<8x256xf32>
    %c23 = arith.constant 23 : index
    %c0_56 = arith.constant 0 : index
    %c0_57 = arith.constant 0 : index
    %130 = vector.load %arg4[%c23, %c0_56, %c0_57] : memref<25x8x256xf32, #tpu.memory_space<vmem>>, vector<1x8x256xf32>
    %131 = vector.shape_cast %130 : vector<1x8x256xf32> to vector<8x256xf32>
    %132 = arith.mulf %129, %131 : vector<8x256xf32>
    %133 = arith.addf %128, %132 : vector<8x256xf32>
    %c222_i32 = arith.constant 222 : i32
    %134 = tpu.dynamic_rotate %12 by %c222_i32 dim 1 : vector<8x256xf32>, i32 -> vector<8x256xf32>
    %c24 = arith.constant 24 : index
    %c0_58 = arith.constant 0 : index
    %c0_59 = arith.constant 0 : index
    %135 = vector.load %arg4[%c24, %c0_58, %c0_59] : memref<25x8x256xf32, #tpu.memory_space<vmem>>, vector<1x8x256xf32>
    %136 = vector.shape_cast %135 : vector<1x8x256xf32> to vector<8x256xf32>
    %137 = arith.mulf %134, %136 : vector<8x256xf32>
    %138 = arith.addf %133, %137 : vector<8x256xf32>
    %139 = arith.negf %138 : vector<8x256xf32>
    %140 = math.exp %139 : vector<8x256xf32>
    %cst_60 = arith.constant 1.000000e+00 : f32
    %141 = vector.broadcast %cst_60 : f32 to vector<8x256xf32>
    %142 = arith.addf %141, %140 : vector<8x256xf32>
    %143 = arith.divf %141, %142 : vector<8x256xf32>
    %144 = arith.mulf %138, %143 : vector<8x256xf32>
    %145 = tpu.concatenate %12, %144 in 0 : vector<8x256xf32>, vector<8x256xf32> -> vector<16x256xf32>
    %c0_61 = arith.constant 0 : index
    %c0_62 = arith.constant 0 : index
    %146 = vector.load %arg6[%c0_61, %c0_62] : memref<16x16xf32, #tpu.memory_space<vmem>>, vector<16x16xf32>
    %cst_63 = arith.constant dense<0.000000e+00> : vector<16x256xf32>
    %147 = tpu.matmul %146, %145, %cst_63 {dimension_numbers = #tpu.dot_dimension_numbers<[1], [0], [0], [1], [0, 0, 1, 1], [], []>} : vector<16x16xf32>, vector<16x256xf32>, vector<16x256xf32> -> vector<16x256xf32>
    %c0_64 = arith.constant 0 : index
    %c0_65 = arith.constant 0 : index
    %148 = vector.load %arg7[%c0_64, %c0_65] : memref<16x1xf32, #tpu.memory_space<vmem>>, vector<16x1xf32>
    %149 = vector.broadcast %148 : vector<16x1xf32> to vector<16x256xf32>
    %150 = arith.addf %147, %149 : vector<16x256xf32>
    %c12_66 = arith.constant 12 : index
    %c0_67 = arith.constant 0 : index
    %c0_68 = arith.constant 0 : index
    %151 = vector.load %arg8[%c12_66, %c0_67, %c0_68] : memref<25x16x256xf32, #tpu.memory_space<vmem>>, vector<1x16x256xf32>
    %152 = vector.shape_cast %151 : vector<1x16x256xf32> to vector<16x256xf32>
    %153 = arith.mulf %150, %152 : vector<16x256xf32>
    %c0_69 = arith.constant 0 : index
    %c0_70 = arith.constant 0 : index
    %154 = vector.load %arg9[%c0_69, %c0_70] : memref<16x1xf32, #tpu.memory_space<vmem>>, vector<16x1xf32>
    %155 = vector.broadcast %154 : vector<16x1xf32> to vector<16x256xf32>
    %156 = arith.addf %153, %155 : vector<16x256xf32>
    %c34_i32_71 = arith.constant 34 : i32
    %157 = tpu.dynamic_rotate %150 by %c34_i32_71 dim 1 : vector<16x256xf32>, i32 -> vector<16x256xf32>
    %c0_72 = arith.constant 0 : index
    %c0_73 = arith.constant 0 : index
    %c0_74 = arith.constant 0 : index
    %158 = vector.load %arg8[%c0_72, %c0_73, %c0_74] : memref<25x16x256xf32, #tpu.memory_space<vmem>>, vector<1x16x256xf32>
    %159 = vector.shape_cast %158 : vector<1x16x256xf32> to vector<16x256xf32>
    %160 = arith.mulf %157, %159 : vector<16x256xf32>
    %161 = arith.addf %156, %160 : vector<16x256xf32>
    %c33_i32_75 = arith.constant 33 : i32
    %162 = tpu.dynamic_rotate %150 by %c33_i32_75 dim 1 : vector<16x256xf32>, i32 -> vector<16x256xf32>
    %c1_76 = arith.constant 1 : index
    %c0_77 = arith.constant 0 : index
    %c0_78 = arith.constant 0 : index
    %163 = vector.load %arg8[%c1_76, %c0_77, %c0_78] : memref<25x16x256xf32, #tpu.memory_space<vmem>>, vector<1x16x256xf32>
    %164 = vector.shape_cast %163 : vector<1x16x256xf32> to vector<16x256xf32>
    %165 = arith.mulf %162, %164 : vector<16x256xf32>
    %166 = arith.addf %161, %165 : vector<16x256xf32>
    %c32_i32_79 = arith.constant 32 : i32
    %167 = tpu.dynamic_rotate %150 by %c32_i32_79 dim 1 : vector<16x256xf32>, i32 -> vector<16x256xf32>
    %c2_80 = arith.constant 2 : index
    %c0_81 = arith.constant 0 : index
    %c0_82 = arith.constant 0 : index
    %168 = vector.load %arg8[%c2_80, %c0_81, %c0_82] : memref<25x16x256xf32, #tpu.memory_space<vmem>>, vector<1x16x256xf32>
    %169 = vector.shape_cast %168 : vector<1x16x256xf32> to vector<16x256xf32>
    %170 = arith.mulf %167, %169 : vector<16x256xf32>
    %171 = arith.addf %166, %170 : vector<16x256xf32>
    %c31_i32_83 = arith.constant 31 : i32
    %172 = tpu.dynamic_rotate %150 by %c31_i32_83 dim 1 : vector<16x256xf32>, i32 -> vector<16x256xf32>
    %c3_84 = arith.constant 3 : index
    %c0_85 = arith.constant 0 : index
    %c0_86 = arith.constant 0 : index
    %173 = vector.load %arg8[%c3_84, %c0_85, %c0_86] : memref<25x16x256xf32, #tpu.memory_space<vmem>>, vector<1x16x256xf32>
    %174 = vector.shape_cast %173 : vector<1x16x256xf32> to vector<16x256xf32>
    %175 = arith.mulf %172, %174 : vector<16x256xf32>
    %176 = arith.addf %171, %175 : vector<16x256xf32>
    %c30_i32_87 = arith.constant 30 : i32
    %177 = tpu.dynamic_rotate %150 by %c30_i32_87 dim 1 : vector<16x256xf32>, i32 -> vector<16x256xf32>
    %c4_88 = arith.constant 4 : index
    %c0_89 = arith.constant 0 : index
    %c0_90 = arith.constant 0 : index
    %178 = vector.load %arg8[%c4_88, %c0_89, %c0_90] : memref<25x16x256xf32, #tpu.memory_space<vmem>>, vector<1x16x256xf32>
    %179 = vector.shape_cast %178 : vector<1x16x256xf32> to vector<16x256xf32>
    %180 = arith.mulf %177, %179 : vector<16x256xf32>
    %181 = arith.addf %176, %180 : vector<16x256xf32>
    %c18_i32_91 = arith.constant 18 : i32
    %182 = tpu.dynamic_rotate %150 by %c18_i32_91 dim 1 : vector<16x256xf32>, i32 -> vector<16x256xf32>
    %c5_92 = arith.constant 5 : index
    %c0_93 = arith.constant 0 : index
    %c0_94 = arith.constant 0 : index
    %183 = vector.load %arg8[%c5_92, %c0_93, %c0_94] : memref<25x16x256xf32, #tpu.memory_space<vmem>>, vector<1x16x256xf32>
    %184 = vector.shape_cast %183 : vector<1x16x256xf32> to vector<16x256xf32>
    %185 = arith.mulf %182, %184 : vector<16x256xf32>
    %186 = arith.addf %181, %185 : vector<16x256xf32>
    %c17_i32_95 = arith.constant 17 : i32
    %187 = tpu.dynamic_rotate %150 by %c17_i32_95 dim 1 : vector<16x256xf32>, i32 -> vector<16x256xf32>
    %c6_96 = arith.constant 6 : index
    %c0_97 = arith.constant 0 : index
    %c0_98 = arith.constant 0 : index
    %188 = vector.load %arg8[%c6_96, %c0_97, %c0_98] : memref<25x16x256xf32, #tpu.memory_space<vmem>>, vector<1x16x256xf32>
    %189 = vector.shape_cast %188 : vector<1x16x256xf32> to vector<16x256xf32>
    %190 = arith.mulf %187, %189 : vector<16x256xf32>
    %191 = arith.addf %186, %190 : vector<16x256xf32>
    %c16_i32_99 = arith.constant 16 : i32
    %192 = tpu.dynamic_rotate %150 by %c16_i32_99 dim 1 : vector<16x256xf32>, i32 -> vector<16x256xf32>
    %c7_100 = arith.constant 7 : index
    %c0_101 = arith.constant 0 : index
    %c0_102 = arith.constant 0 : index
    %193 = vector.load %arg8[%c7_100, %c0_101, %c0_102] : memref<25x16x256xf32, #tpu.memory_space<vmem>>, vector<1x16x256xf32>
    %194 = vector.shape_cast %193 : vector<1x16x256xf32> to vector<16x256xf32>
    %195 = arith.mulf %192, %194 : vector<16x256xf32>
    %196 = arith.addf %191, %195 : vector<16x256xf32>
    %c15_i32_103 = arith.constant 15 : i32
    %197 = tpu.dynamic_rotate %150 by %c15_i32_103 dim 1 : vector<16x256xf32>, i32 -> vector<16x256xf32>
    %c8_104 = arith.constant 8 : index
    %c0_105 = arith.constant 0 : index
    %c0_106 = arith.constant 0 : index
    %198 = vector.load %arg8[%c8_104, %c0_105, %c0_106] : memref<25x16x256xf32, #tpu.memory_space<vmem>>, vector<1x16x256xf32>
    %199 = vector.shape_cast %198 : vector<1x16x256xf32> to vector<16x256xf32>
    %200 = arith.mulf %197, %199 : vector<16x256xf32>
    %201 = arith.addf %196, %200 : vector<16x256xf32>
    %c14_i32_107 = arith.constant 14 : i32
    %202 = tpu.dynamic_rotate %150 by %c14_i32_107 dim 1 : vector<16x256xf32>, i32 -> vector<16x256xf32>
    %c9_108 = arith.constant 9 : index
    %c0_109 = arith.constant 0 : index
    %c0_110 = arith.constant 0 : index
    %203 = vector.load %arg8[%c9_108, %c0_109, %c0_110] : memref<25x16x256xf32, #tpu.memory_space<vmem>>, vector<1x16x256xf32>
    %204 = vector.shape_cast %203 : vector<1x16x256xf32> to vector<16x256xf32>
    %205 = arith.mulf %202, %204 : vector<16x256xf32>
    %206 = arith.addf %201, %205 : vector<16x256xf32>
    %c2_i32_111 = arith.constant 2 : i32
    %207 = tpu.dynamic_rotate %150 by %c2_i32_111 dim 1 : vector<16x256xf32>, i32 -> vector<16x256xf32>
    %c10_112 = arith.constant 10 : index
    %c0_113 = arith.constant 0 : index
    %c0_114 = arith.constant 0 : index
    %208 = vector.load %arg8[%c10_112, %c0_113, %c0_114] : memref<25x16x256xf32, #tpu.memory_space<vmem>>, vector<1x16x256xf32>
    %209 = vector.shape_cast %208 : vector<1x16x256xf32> to vector<16x256xf32>
    %210 = arith.mulf %207, %209 : vector<16x256xf32>
    %211 = arith.addf %206, %210 : vector<16x256xf32>
    %c1_i32_115 = arith.constant 1 : i32
    %212 = tpu.dynamic_rotate %150 by %c1_i32_115 dim 1 : vector<16x256xf32>, i32 -> vector<16x256xf32>
    %c11_116 = arith.constant 11 : index
    %c0_117 = arith.constant 0 : index
    %c0_118 = arith.constant 0 : index
    %213 = vector.load %arg8[%c11_116, %c0_117, %c0_118] : memref<25x16x256xf32, #tpu.memory_space<vmem>>, vector<1x16x256xf32>
    %214 = vector.shape_cast %213 : vector<1x16x256xf32> to vector<16x256xf32>
    %215 = arith.mulf %212, %214 : vector<16x256xf32>
    %216 = arith.addf %211, %215 : vector<16x256xf32>
    %c255_i32_119 = arith.constant 255 : i32
    %217 = tpu.dynamic_rotate %150 by %c255_i32_119 dim 1 : vector<16x256xf32>, i32 -> vector<16x256xf32>
    %c13_120 = arith.constant 13 : index
    %c0_121 = arith.constant 0 : index
    %c0_122 = arith.constant 0 : index
    %218 = vector.load %arg8[%c13_120, %c0_121, %c0_122] : memref<25x16x256xf32, #tpu.memory_space<vmem>>, vector<1x16x256xf32>
    %219 = vector.shape_cast %218 : vector<1x16x256xf32> to vector<16x256xf32>
    %220 = arith.mulf %217, %219 : vector<16x256xf32>
    %221 = arith.addf %216, %220 : vector<16x256xf32>
    %c254_i32_123 = arith.constant 254 : i32
    %222 = tpu.dynamic_rotate %150 by %c254_i32_123 dim 1 : vector<16x256xf32>, i32 -> vector<16x256xf32>
    %c14_124 = arith.constant 14 : index
    %c0_125 = arith.constant 0 : index
    %c0_126 = arith.constant 0 : index
    %223 = vector.load %arg8[%c14_124, %c0_125, %c0_126] : memref<25x16x256xf32, #tpu.memory_space<vmem>>, vector<1x16x256xf32>
    %224 = vector.shape_cast %223 : vector<1x16x256xf32> to vector<16x256xf32>
    %225 = arith.mulf %222, %224 : vector<16x256xf32>
    %226 = arith.addf %221, %225 : vector<16x256xf32>
    %c242_i32_127 = arith.constant 242 : i32
    %227 = tpu.dynamic_rotate %150 by %c242_i32_127 dim 1 : vector<16x256xf32>, i32 -> vector<16x256xf32>
    %c15_128 = arith.constant 15 : index
    %c0_129 = arith.constant 0 : index
    %c0_130 = arith.constant 0 : index
    %228 = vector.load %arg8[%c15_128, %c0_129, %c0_130] : memref<25x16x256xf32, #tpu.memory_space<vmem>>, vector<1x16x256xf32>
    %229 = vector.shape_cast %228 : vector<1x16x256xf32> to vector<16x256xf32>
    %230 = arith.mulf %227, %229 : vector<16x256xf32>
    %231 = arith.addf %226, %230 : vector<16x256xf32>
    %c241_i32_131 = arith.constant 241 : i32
    %232 = tpu.dynamic_rotate %150 by %c241_i32_131 dim 1 : vector<16x256xf32>, i32 -> vector<16x256xf32>
    %c16_132 = arith.constant 16 : index
    %c0_133 = arith.constant 0 : index
    %c0_134 = arith.constant 0 : index
    %233 = vector.load %arg8[%c16_132, %c0_133, %c0_134] : memref<25x16x256xf32, #tpu.memory_space<vmem>>, vector<1x16x256xf32>
    %234 = vector.shape_cast %233 : vector<1x16x256xf32> to vector<16x256xf32>
    %235 = arith.mulf %232, %234 : vector<16x256xf32>
    %236 = arith.addf %231, %235 : vector<16x256xf32>
    %c240_i32_135 = arith.constant 240 : i32
    %237 = tpu.dynamic_rotate %150 by %c240_i32_135 dim 1 : vector<16x256xf32>, i32 -> vector<16x256xf32>
    %c17_136 = arith.constant 17 : index
    %c0_137 = arith.constant 0 : index
    %c0_138 = arith.constant 0 : index
    %238 = vector.load %arg8[%c17_136, %c0_137, %c0_138] : memref<25x16x256xf32, #tpu.memory_space<vmem>>, vector<1x16x256xf32>
    %239 = vector.shape_cast %238 : vector<1x16x256xf32> to vector<16x256xf32>
    %240 = arith.mulf %237, %239 : vector<16x256xf32>
    %241 = arith.addf %236, %240 : vector<16x256xf32>
    %c239_i32_139 = arith.constant 239 : i32
    %242 = tpu.dynamic_rotate %150 by %c239_i32_139 dim 1 : vector<16x256xf32>, i32 -> vector<16x256xf32>
    %c18_140 = arith.constant 18 : index
    %c0_141 = arith.constant 0 : index
    %c0_142 = arith.constant 0 : index
    %243 = vector.load %arg8[%c18_140, %c0_141, %c0_142] : memref<25x16x256xf32, #tpu.memory_space<vmem>>, vector<1x16x256xf32>
    %244 = vector.shape_cast %243 : vector<1x16x256xf32> to vector<16x256xf32>
    %245 = arith.mulf %242, %244 : vector<16x256xf32>
    %246 = arith.addf %241, %245 : vector<16x256xf32>
    %c238_i32_143 = arith.constant 238 : i32
    %247 = tpu.dynamic_rotate %150 by %c238_i32_143 dim 1 : vector<16x256xf32>, i32 -> vector<16x256xf32>
    %c19_144 = arith.constant 19 : index
    %c0_145 = arith.constant 0 : index
    %c0_146 = arith.constant 0 : index
    %248 = vector.load %arg8[%c19_144, %c0_145, %c0_146] : memref<25x16x256xf32, #tpu.memory_space<vmem>>, vector<1x16x256xf32>
    %249 = vector.shape_cast %248 : vector<1x16x256xf32> to vector<16x256xf32>
    %250 = arith.mulf %247, %249 : vector<16x256xf32>
    %251 = arith.addf %246, %250 : vector<16x256xf32>
    %c226_i32_147 = arith.constant 226 : i32
    %252 = tpu.dynamic_rotate %150 by %c226_i32_147 dim 1 : vector<16x256xf32>, i32 -> vector<16x256xf32>
    %c20_148 = arith.constant 20 : index
    %c0_149 = arith.constant 0 : index
    %c0_150 = arith.constant 0 : index
    %253 = vector.load %arg8[%c20_148, %c0_149, %c0_150] : memref<25x16x256xf32, #tpu.memory_space<vmem>>, vector<1x16x256xf32>
    %254 = vector.shape_cast %253 : vector<1x16x256xf32> to vector<16x256xf32>
    %255 = arith.mulf %252, %254 : vector<16x256xf32>
    %256 = arith.addf %251, %255 : vector<16x256xf32>
    %c225_i32_151 = arith.constant 225 : i32
    %257 = tpu.dynamic_rotate %150 by %c225_i32_151 dim 1 : vector<16x256xf32>, i32 -> vector<16x256xf32>
    %c21_152 = arith.constant 21 : index
    %c0_153 = arith.constant 0 : index
    %c0_154 = arith.constant 0 : index
    %258 = vector.load %arg8[%c21_152, %c0_153, %c0_154] : memref<25x16x256xf32, #tpu.memory_space<vmem>>, vector<1x16x256xf32>
    %259 = vector.shape_cast %258 : vector<1x16x256xf32> to vector<16x256xf32>
    %260 = arith.mulf %257, %259 : vector<16x256xf32>
    %261 = arith.addf %256, %260 : vector<16x256xf32>
    %c224_i32_155 = arith.constant 224 : i32
    %262 = tpu.dynamic_rotate %150 by %c224_i32_155 dim 1 : vector<16x256xf32>, i32 -> vector<16x256xf32>
    %c22_156 = arith.constant 22 : index
    %c0_157 = arith.constant 0 : index
    %c0_158 = arith.constant 0 : index
    %263 = vector.load %arg8[%c22_156, %c0_157, %c0_158] : memref<25x16x256xf32, #tpu.memory_space<vmem>>, vector<1x16x256xf32>
    %264 = vector.shape_cast %263 : vector<1x16x256xf32> to vector<16x256xf32>
    %265 = arith.mulf %262, %264 : vector<16x256xf32>
    %266 = arith.addf %261, %265 : vector<16x256xf32>
    %c223_i32_159 = arith.constant 223 : i32
    %267 = tpu.dynamic_rotate %150 by %c223_i32_159 dim 1 : vector<16x256xf32>, i32 -> vector<16x256xf32>
    %c23_160 = arith.constant 23 : index
    %c0_161 = arith.constant 0 : index
    %c0_162 = arith.constant 0 : index
    %268 = vector.load %arg8[%c23_160, %c0_161, %c0_162] : memref<25x16x256xf32, #tpu.memory_space<vmem>>, vector<1x16x256xf32>
    %269 = vector.shape_cast %268 : vector<1x16x256xf32> to vector<16x256xf32>
    %270 = arith.mulf %267, %269 : vector<16x256xf32>
    %271 = arith.addf %266, %270 : vector<16x256xf32>
    %c222_i32_163 = arith.constant 222 : i32
    %272 = tpu.dynamic_rotate %150 by %c222_i32_163 dim 1 : vector<16x256xf32>, i32 -> vector<16x256xf32>
    %c24_164 = arith.constant 24 : index
    %c0_165 = arith.constant 0 : index
    %c0_166 = arith.constant 0 : index
    %273 = vector.load %arg8[%c24_164, %c0_165, %c0_166] : memref<25x16x256xf32, #tpu.memory_space<vmem>>, vector<1x16x256xf32>
    %274 = vector.shape_cast %273 : vector<1x16x256xf32> to vector<16x256xf32>
    %275 = arith.mulf %272, %274 : vector<16x256xf32>
    %276 = arith.addf %271, %275 : vector<16x256xf32>
    %277 = vector.extract_strided_slice %1 {offsets = [0, 0], sizes = [16, 256], strides = [1, 1]} : vector<32x256xf32> to vector<16x256xf32>
    %278 = arith.addf %150, %277 : vector<16x256xf32>
    %c0_167 = arith.constant 0 : index
    %c0_168 = arith.constant 0 : index
    %c0_169 = arith.constant 0 : index
    %279 = vector.load %arg10[%c0_167, %c0_168, %c0_169] : memref<1x32x256xf32, #tpu.memory_space<vmem>>, vector<1x16x256xf32>
    %280 = vector.shape_cast %279 : vector<1x16x256xf32> to vector<16x256xf32>
    %281 = vector.shape_cast %278 : vector<16x256xf32> to vector<1x16x256xf32>
    tpu.vector_store %arg10[%c0_167, %c0_168, %c0_169], %281 {strides = array<i32>} : memref<1x32x256xf32, #tpu.memory_space<vmem>>, vector<1x16x256xf32>,
    %282 = vector.extract_strided_slice %1 {offsets = [16, 0], sizes = [16, 256], strides = [1, 1]} : vector<32x256xf32> to vector<16x256xf32>
    %283 = arith.addf %276, %282 : vector<16x256xf32>
    %c0_170 = arith.constant 0 : index
    %c16_171 = arith.constant 16 : index
    %c0_172 = arith.constant 0 : index
    %284 = vector.load %arg10[%c0_170, %c16_171, %c0_172] : memref<1x32x256xf32, #tpu.memory_space<vmem>>, vector<1x16x256xf32>
    %285 = vector.shape_cast %284 : vector<1x16x256xf32> to vector<16x256xf32>
    %286 = vector.shape_cast %283 : vector<16x256xf32> to vector<1x16x256xf32>
    tpu.vector_store %arg10[%c0_170, %c16_171, %c0_172], %286 {strides = array<i32>} : memref<1x32x256xf32, #tpu.memory_space<vmem>>, vector<1x16x256xf32>,
    return
  }
  func.func @transform_0(%arg0: i32) -> (i32, i32, i32) {
    %c0_i32 = arith.constant 0 : i32
    %c0_i32_0 = arith.constant 0 : i32
    %c0_i32_1 = arith.constant 0 : i32
    return %arg0, %c0_i32, %c0_i32_0 : i32, i32, i32
  }
  func.func @transform_1(%arg0: i32) -> (i32, i32) {
    %c0_i32 = arith.constant 0 : i32
    %c0_i32_0 = arith.constant 0 : i32
    %c0_i32_1 = arith.constant 0 : i32
    return %c0_i32, %c0_i32_0 : i32, i32
  }
  func.func @transform_2(%arg0: i32) -> (i32, i32) {
    %c0_i32 = arith.constant 0 : i32
    %c0_i32_0 = arith.constant 0 : i32
    %c0_i32_1 = arith.constant 0 : i32
    return %c0_i32, %c0_i32_0 : i32, i32
  }
  func.func @transform_3(%arg0: i32) -> (i32, i32, i32) {
    %c0_i32 = arith.constant 0 : i32
    %c0_i32_0 = arith.constant 0 : i32
    %c0_i32_1 = arith.constant 0 : i32
    %c0_i32_2 = arith.constant 0 : i32
    return %c0_i32, %c0_i32_0, %c0_i32_1 : i32, i32, i32
  }
  func.func @transform_4(%arg0: i32) -> (i32, i32) {
    %c0_i32 = arith.constant 0 : i32
    %c0_i32_0 = arith.constant 0 : i32
    %c0_i32_1 = arith.constant 0 : i32
    return %c0_i32, %c0_i32_0 : i32, i32
  }
  func.func @transform_5(%arg0: i32) -> (i32, i32) {
    %c0_i32 = arith.constant 0 : i32
    %c0_i32_0 = arith.constant 0 : i32
    %c0_i32_1 = arith.constant 0 : i32
    return %c0_i32, %c0_i32_0 : i32, i32
  }
  func.func @transform_6(%arg0: i32) -> (i32, i32) {
    %c0_i32 = arith.constant 0 : i32
    %c0_i32_0 = arith.constant 0 : i32
    %c0_i32_1 = arith.constant 0 : i32
    return %c0_i32, %c0_i32_0 : i32, i32
  }
  func.func @transform_7(%arg0: i32) -> (i32, i32, i32) {
    %c0_i32 = arith.constant 0 : i32
    %c0_i32_0 = arith.constant 0 : i32
    %c0_i32_1 = arith.constant 0 : i32
    %c0_i32_2 = arith.constant 0 : i32
    return %c0_i32, %c0_i32_0, %c0_i32_1 : i32, i32, i32
  }
  func.func @transform_8(%arg0: i32) -> (i32, i32) {
    %c0_i32 = arith.constant 0 : i32
    %c0_i32_0 = arith.constant 0 : i32
    %c0_i32_1 = arith.constant 0 : i32
    return %c0_i32, %c0_i32_0 : i32, i32
  }
  func.func @transform_9(%arg0: i32) -> (i32, i32, i32) {
    %c0_i32 = arith.constant 0 : i32
    %c0_i32_0 = arith.constant 0 : i32
    %c0_i32_1 = arith.constant 0 : i32
    return %arg0, %c0_i32, %c0_i32_0 : i32, i32, i32
  }
}

</mosaic_0001>

<llo_original>
// kernel: tpu_custom_call.1
$region0: #{tpu_custom_call.1}
  #allocation0 [shape = 'u32[]', space=smem, size = 0x4, offset = 0x4, fixed_abs, tag = 'smem constant byte address 0x4 - core index']
  #allocation1 [shape = 'u32[144,128]{1,0:T(1,128)}', space=vmem, size = 0x12000, scoped, tag = 'internal scratch']
  %s0 = inlined_call_operand.hbm [shape: f32[2,32,256], index: 0, kind: input, shape index: {}]
  %s1 = inlined_call_operand.vmem [shape: f32[8,32], index: 1, kind: input, shape index: {}]
  %s2 = inlined_call_operand.vmem [shape: f32[8,1], index: 2, kind: input, shape index: {}]
  %s3 = inlined_call_operand.hbm [shape: f32[25,8,256], index: 3, kind: input, shape index: {}]
  %s4 = inlined_call_operand.vmem [shape: f32[8,1], index: 4, kind: input, shape index: {}]
  %s5 = inlined_call_operand.vmem [shape: f32[16,16], index: 5, kind: input, shape index: {}]
  %s6 = inlined_call_operand.vmem [shape: f32[16,1], index: 6, kind: input, shape index: {}]
  %s7 = inlined_call_operand.hbm [shape: f32[25,16,256], index: 7, kind: input, shape index: {}]
  %s8 = inlined_call_operand.vmem [shape: f32[16,1], index: 8, kind: input, shape index: {}]
  %s9 = inlined_call_operand.hbm [shape: f32[2,32,256], index: 9, kind: output, shape index: {}]
  %s10 = sld [smem:[#allocation0]]
  $region81: #{tpu_custom_call.1} parent=0
    _
  %s12 = ssub.s32 1, %s10
  %s13 = scalar_select 0, %s12, %s10
  $region1: #{tpu_custom_call.1} parent=0
    #allocation2 [shape = 'u8[65536]{0}', space=vmem, size = 0x10000, scoped, tag = 'input window, operand 0']
    #allocation3 [shape = 's32[2]{0}', space=sflag, size = 0x8, scoped, tag = 'scoped memory for tpu_custom_call.1']
    #allocation4 [shape = 's32[2]{0}', space=sflag, size = 0x8, scoped, tag = 'scoped memory for tpu_custom_call.1']
    #allocation5 [shape = 'u8[204800]{0}', space=vmem, size = 0x32000, scoped, tag = 'input window, operand 3, single buffered']
    #allocation6 [shape = 's32[1]{0}', space=sflag, size = 0x4, scoped, tag = 'scoped memory for tpu_custom_call.1']
    #allocation7 [shape = 'u8[409600]{0}', space=vmem, size = 0x64000, scoped, tag = 'input window, operand 7, single buffered']
    #allocation8 [shape = 'u8[65536]{0}', space=vmem, size = 0x10000, scoped, tag = 'output window, operand 0']
    %14 = vsyncpa [#allocation3], 0
    %s15 = scalar_lea.sflag [#allocation3], 1
    %16 = vsyncpa %s15, 0
    %17 = vsyncpa [#allocation6], 0
    %18 = vsyncpa [#allocation4], 0
    %s19 = scalar_lea.sflag [#allocation4], 1
    %20 = vsyncpa %s19, 0
    loop: start=0, step=1, limit=4
    $region2: #{tpu_custom_call.1} parent=1 // loop_pre_header
      _
    $region3: #{tpu_custom_call.1} parent=1 // loop_header
      %s22 = sphi 0, %s26
      %p23 = scmp.ge.s32.totalorder %s22, 4
      %s32 = sphi 0, %s34
      %s35 = sphi 0, %s32
      %s36 = sphi 0, %s35
      %s52 = sphi 0, %s36
      %s56 = sphi 0, %s56
      %s58 = sphi 0, %s56
      %s59 = sphi 0, %s58
      %s73 = sphi 0, %s59
      %s77 = sphi 0, %s77
      %s79 = sphi 0, %s77
      %s80 = sphi 0, %s79
      %s94 = sphi 0, %s80
      %s98 = sphi 0, %s98
      %s100 = sphi 0, %s98
      %s101 = sphi 0, %s100
      %s115 = sphi 0, %s101
      %s119 = sphi 0, %s119
      %s121 = sphi 0, %s119
      %s122 = sphi 0, %s121
      %s136 = sphi 0, %s122
      %s140 = sphi 0, %s140
      %s142 = sphi 0, %s140
      %s143 = sphi 0, %s142
      %s157 = sphi 0, %s143
      %s161 = sphi 0, %s161
      %s163 = sphi 0, %s161
      %s164 = sphi 0, %s163
      %s178 = sphi 0, %s164
      %s182 = sphi 0, %s182
      %s184 = sphi 0, %s182
      %s185 = sphi 0, %s184
      %s199 = sphi 0, %s185
      %s203 = sphi 0, %s203
      %s205 = sphi 0, %s203
      %s206 = sphi 0, %s205
      %s220 = sphi 0, %s206
      %s226 = sphi 0, %s228
      %s229 = sphi 0, %s226
      %s230 = sphi 0, %s229
      %s246 = sphi 0, %s230
    $region4: #{tpu_custom_call.1} parent=1 // loop_header_branch
      %25 = sbr.rel (%p23) target = $region8
    $region5: #{tpu_custom_call.1} parent=1 // loop_body
      %s27 = ssub.s32 %s22, 1
      %s28 = ssub.s32 %s22, 2
      %s29 = sadd.s32 %s22, 1
      %s30 = ssub.s32 %s22, %s29
      %p31 = scmp.eq.s32.totalorder %s30, 0
      %s33 = sadd.s32 %s32, 1
      %s34 = scalar_select %p31, %s32, %s33
      %p37 = pneg %p31
      %p38 = scmp.eq.s32.totalorder %s22, 1
      %p39 = por %p37, %p38
      %p40 = scmp.ne.s32.totalorder %s32, %s35
      %p41 = scmp.eq.s32.totalorder %s22, 0
      %p42 = por %p40, %p41
      %p43 = scmp.ne.s32.totalorder %s32, %s35
      %p44 = scmp.eq.s32.totalorder %s27, 1
      %p45 = por %p43, %p44
      %p46 = scmp.ne.s32.totalorder %s35, %s36
      %p47 = scmp.eq.s32.totalorder %s27, 0
      %p48 = por %p46, %p47
      %p49 = scmp.ne.s32.totalorder %s35, %s36
      %p50 = scmp.eq.s32.totalorder %s28, 1
      %p51 = por %p49, %p50
      %p53 = scmp.ne.s32.totalorder %s36, %s52
      %p54 = scmp.eq.s32.totalorder %s28, 0
      %p55 = por %p53, %p54
      %s57 = sadd.s32 %s56, 1
      %p60 = scmp.eq.s32.totalorder %s22, 1
      %p61 = scmp.ne.s32.totalorder %s56, %s58
      %p62 = scmp.eq.s32.totalorder %s22, 0
      %p63 = por %p61, %p62
      %p64 = scmp.ne.s32.totalorder %s56, %s58
      %p65 = scmp.eq.s32.totalorder %s27, 1
      %p66 = por %p64, %p65
      %p67 = scmp.ne.s32.totalorder %s58, %s59
      %p68 = scmp.eq.s32.totalorder %s27, 0
      %p69 = por %p67, %p68
      %p70 = scmp.ne.s32.totalorder %s58, %s59
      %p71 = scmp.eq.s32.totalorder %s28, 1
      %p72 = por %p70, %p71
      %p74 = scmp.ne.s32.totalorder %s59, %s73
      %p75 = scmp.eq.s32.totalorder %s28, 0
      %p76 = por %p74, %p75
      %s78 = sadd.s32 %s77, 1
      %p81 = scmp.eq.s32.totalorder %s22, 1
      %p82 = scmp.ne.s32.totalorder %s77, %s79
      %p83 = scmp.eq.s32.totalorder %s22, 0
      %p84 = por %p82, %p83
      %p85 = scmp.ne.s32.totalorder %s77, %s79
      %p86 = scmp.eq.s32.totalorder %s27, 1
      %p87 = por %p85, %p86
      %p88 = scmp.ne.s32.totalorder %s79, %s80
      %p89 = scmp.eq.s32.totalorder %s27, 0
      %p90 = por %p88, %p89
      %p91 = scmp.ne.s32.totalorder %s79, %s80
      %p92 = scmp.eq.s32.totalorder %s28, 1
      %p93 = por %p91, %p92
      %p95 = scmp.ne.s32.totalorder %s80, %s94
      %p96 = scmp.eq.s32.totalorder %s28, 0
      %p97 = por %p95, %p96
      %s99 = sadd.s32 %s98, 1
      %p102 = scmp.eq.s32.totalorder %s22, 1
      %p103 = scmp.ne.s32.totalorder %s98, %s100
      %p104 = scmp.eq.s32.totalorder %s22, 0
      %p105 = por %p103, %p104
      %p106 = scmp.ne.s32.totalorder %s98, %s100
      %p107 = scmp.eq.s32.totalorder %s27, 1
      %p108 = por %p106, %p107
      %p109 = scmp.ne.s32.totalorder %s100, %s101
      %p110 = scmp.eq.s32.totalorder %s27, 0
      %p111 = por %p109, %p110
      %p112 = scmp.ne.s32.totalorder %s100, %s101
      %p113 = scmp.eq.s32.totalorder %s28, 1
      %p114 = por %p112, %p113
      %p116 = scmp.ne.s32.totalorder %s101, %s115
      %p117 = scmp.eq.s32.totalorder %s28, 0
      %p118 = por %p116, %p117
      %s120 = sadd.s32 %s119, 1
      %p123 = scmp.eq.s32.totalorder %s22, 1
      %p124 = scmp.ne.s32.totalorder %s119, %s121
      %p125 = scmp.eq.s32.totalorder %s22, 0
      %p126 = por %p124, %p125
      %p127 = scmp.ne.s32.totalorder %s119, %s121
      %p128 = scmp.eq.s32.totalorder %s27, 1
      %p129 = por %p127, %p128
      %p130 = scmp.ne.s32.totalorder %s121, %s122
      %p131 = scmp.eq.s32.totalorder %s27, 0
      %p132 = por %p130, %p131
      %p133 = scmp.ne.s32.totalorder %s121, %s122
      %p134 = scmp.eq.s32.totalorder %s28, 1
      %p135 = por %p133, %p134
      %p137 = scmp.ne.s32.totalorder %s122, %s136
      %p138 = scmp.eq.s32.totalorder %s28, 0
      %p139 = por %p137, %p138
      %s141 = sadd.s32 %s140, 1
      %p144 = scmp.eq.s32.totalorder %s22, 1
      %p145 = scmp.ne.s32.totalorder %s140, %s142
      %p146 = scmp.eq.s32.totalorder %s22, 0
      %p147 = por %p145, %p146
      %p148 = scmp.ne.s32.totalorder %s140, %s142
      %p149 = scmp.eq.s32.totalorder %s27, 1
      %p150 = por %p148, %p149
      %p151 = scmp.ne.s32.totalorder %s142, %s143
      %p152 = scmp.eq.s32.totalorder %s27, 0
      %p153 = por %p151, %p152
      %p154 = scmp.ne.s32.totalorder %s142, %s143
      %p155 = scmp.eq.s32.totalorder %s28, 1
      %p156 = por %p154, %p155
      %p158 = scmp.ne.s32.totalorder %s143, %s157
      %p159 = scmp.eq.s32.totalorder %s28, 0
      %p160 = por %p158, %p159
      %s162 = sadd.s32 %s161, 1
      %p165 = scmp.eq.s32.totalorder %s22, 1
      %p166 = scmp.ne.s32.totalorder %s161, %s163
      %p167 = scmp.eq.s32.totalorder %s22, 0
      %p168 = por %p166, %p167
      %p169 = scmp.ne.s32.totalorder %s161, %s163
      %p170 = scmp.eq.s32.totalorder %s27, 1
      %p171 = por %p169, %p170
      %p172 = scmp.ne.s32.totalorder %s163, %s164
      %p173 = scmp.eq.s32.totalorder %s27, 0
      %p174 = por %p172, %p173
      %p175 = scmp.ne.s32.totalorder %s163, %s164
      %p176 = scmp.eq.s32.totalorder %s28, 1
      %p177 = por %p175, %p176
      %p179 = scmp.ne.s32.totalorder %s164, %s178
      %p180 = scmp.eq.s32.totalorder %s28, 0
      %p181 = por %p179, %p180
      %s183 = sadd.s32 %s182, 1
      %p186 = scmp.eq.s32.totalorder %s22, 1
      %p187 = scmp.ne.s32.totalorder %s182, %s184
      %p188 = scmp.eq.s32.totalorder %s22, 0
      %p189 = por %p187, %p188
      %p190 = scmp.ne.s32.totalorder %s182, %s184
      %p191 = scmp.eq.s32.totalorder %s27, 1
      %p192 = por %p190, %p191
      %p193 = scmp.ne.s32.totalorder %s184, %s185
      %p194 = scmp.eq.s32.totalorder %s27, 0
      %p195 = por %p193, %p194
      %p196 = scmp.ne.s32.totalorder %s184, %s185
      %p197 = scmp.eq.s32.totalorder %s28, 1
      %p198 = por %p196, %p197
      %p200 = scmp.ne.s32.totalorder %s185, %s199
      %p201 = scmp.eq.s32.totalorder %s28, 0
      %p202 = por %p200, %p201
      %s204 = sadd.s32 %s203, 1
      %p207 = scmp.eq.s32.totalorder %s22, 1
      %p208 = scmp.ne.s32.totalorder %s203, %s205
      %p209 = scmp.eq.s32.totalorder %s22, 0
      %p210 = por %p208, %p209
      %p211 = scmp.ne.s32.totalorder %s203, %s205
      %p212 = scmp.eq.s32.totalorder %s27, 1
      %p213 = por %p211, %p212
      %p214 = scmp.ne.s32.totalorder %s205, %s206
      %p215 = scmp.eq.s32.totalorder %s27, 0
      %p216 = por %p214, %p215
      %p217 = scmp.ne.s32.totalorder %s205, %s206
      %p218 = scmp.eq.s32.totalorder %s28, 1
      %p219 = por %p217, %p218
      %p221 = scmp.ne.s32.totalorder %s206, %s220
      %p222 = scmp.eq.s32.totalorder %s28, 0
      %p223 = por %p221, %p222
      %s224 = ssub.s32 %s22, %s29
      %p225 = scmp.eq.s32.totalorder %s224, 0
      %s227 = sadd.s32 %s226, 1
      %s228 = scalar_select %p225, %s226, %s227
      %p231 = pneg %p225
      %p232 = scmp.eq.s32.totalorder %s22, 1
      %p233 = por %p231, %p232
      %p234 = scmp.ne.s32.totalorder %s226, %s229
      %p235 = scmp.eq.s32.totalorder %s22, 0
      %p236 = por %p234, %p235
      %p237 = scmp.ne.s32.totalorder %s226, %s229
      %p238 = scmp.eq.s32.totalorder %s27, 1
      %p239 = por %p237, %p238
      %p240 = scmp.ne.s32.totalorder %s229, %s230
      %p241 = scmp.eq.s32.totalorder %s27, 0
      %p242 = por %p240, %p241
      %p243 = scmp.ne.s32.totalorder %s229, %s230
      %p244 = scmp.eq.s32.totalorder %s28, 1
      %p245 = por %p243, %p244
      %p247 = scmp.ne.s32.totalorder %s230, %s246
      %p248 = scmp.eq.s32.totalorder %s28, 0
      %p249 = por %p247, %p248
      %p250 = scmp.le.s32.totalorder 1, %s22
      %p251 = scmp.lt.s32.totalorder %s22, 3
      %p252 = pnand %p250, %p251
      %p253 = pneg %p252
      // Predicated region
      $region9: #{tpu_custom_call.1} parent=5 // pred_check
        _
      $region10: #{tpu_custom_call.1} parent=5 // pred_check_branch
        %255 = sbr.rel (%p252) target = $region12
      $region11: #{tpu_custom_call.1} parent=5 // pred_region
        %s256 = ssub.s32 %s22, 1
        // Predicated region
        $region13: #{tpu_custom_call.1} parent=11 // pred_check
          %p257 = pneg %p69
        $region14: #{tpu_custom_call.1} parent=11 // pred_check_branch
          %259 = sbr.rel (%p257) target = $region16
        $region15: #{tpu_custom_call.1} parent=11 // pred_region
          _
        $region16: #{tpu_custom_call.1} parent=11 // pred_fallthru
          _
        // Predicated region
        $region17: #{tpu_custom_call.1} parent=11 // pred_check
          %p260 = pneg %p90
        $region18: #{tpu_custom_call.1} parent=11 // pred_check_branch
          %262 = sbr.rel (%p260) target = $region20
        $region19: #{tpu_custom_call.1} parent=11 // pred_region
          _
        $region20: #{tpu_custom_call.1} parent=11 // pred_fallthru
          _
        // Predicated region
        $region21: #{tpu_custom_call.1} parent=11 // pred_check
          %p263 = pneg %p111
        $region22: #{tpu_custom_call.1} parent=11 // pred_check_branch
          %265 = sbr.rel (%p263) target = $region24
        $region23: #{tpu_custom_call.1} parent=11 // pred_region
          %s267 = ssub.s32 6400, 6400
          %268 = vsyncadd [#allocation6], %s267
          %s269 = sshll.u32 [#allocation5], 4
          %s270 = int_to_ptr.vmem [resolvable:$true] %s269
          %275 = dma.hbm_to_vmem [thread:$0]  %s3, 6400, %s270, [#allocation6], 256, 256, 16
        $region24: #{tpu_custom_call.1} parent=11 // pred_fallthru
          _
        // Predicated region
        $region25: #{tpu_custom_call.1} parent=11 // pred_check
          %p276 = pneg %p132
        $region26: #{tpu_custom_call.1} parent=11 // pred_check_branch
          %278 = sbr.rel (%p276) target = $region28
        $region27: #{tpu_custom_call.1} parent=11 // pred_region
          _
        $region28: #{tpu_custom_call.1} parent=11 // pred_fallthru
          _
        // Predicated region
        $region29: #{tpu_custom_call.1} parent=11 // pred_check
          %p279 = pneg %p153
        $region30: #{tpu_custom_call.1} parent=11 // pred_check_branch
          %281 = sbr.rel (%p279) target = $region32
        $region31: #{tpu_custom_call.1} parent=11 // pred_region
          _
        $region32: #{tpu_custom_call.1} parent=11 // pred_fallthru
          _
        // Predicated region
        $region33: #{tpu_custom_call.1} parent=11 // pred_check
          %p282 = pneg %p174
        $region34: #{tpu_custom_call.1} parent=11 // pred_check_branch
          %284 = sbr.rel (%p282) target = $region36
        $region35: #{tpu_custom_call.1} parent=11 // pred_region
          _
        $region36: #{tpu_custom_call.1} parent=11 // pred_fallthru
          _
        // Predicated region
        $region37: #{tpu_custom_call.1} parent=11 // pred_check
          %p285 = pneg %p195
        $region38: #{tpu_custom_call.1} parent=11 // pred_check_branch
          %287 = sbr.rel (%p285) target = $region40
        $region39: #{tpu_custom_call.1} parent=11 // pred_region
          %s289 = ssub.s32 12800, 12800
          %290 = vsyncadd [#allocation6], %s289
          %s291 = sshll.u32 [#allocation7], 4
          %s292 = int_to_ptr.vmem [resolvable:$true] %s291
          %297 = dma.hbm_to_vmem [thread:$0]  %s7, 12800, %s292, [#allocation6], 256, 256, 16
        $region40: #{tpu_custom_call.1} parent=11 // pred_fallthru
          _
        // Predicated region
        $region41: #{tpu_custom_call.1} parent=11 // pred_check
          %p298 = pneg %p216
        $region42: #{tpu_custom_call.1} parent=11 // pred_check_branch
          %300 = sbr.rel (%p298) target = $region44
        $region43: #{tpu_custom_call.1} parent=11 // pred_region
          _
        $region44: #{tpu_custom_call.1} parent=11 // pred_fallthru
          _
      $region12: #{tpu_custom_call.1} parent=5 // pred_fallthru
        _
      %p301 = scmp.lt.s32.totalorder %s22, 2
      // Predicated region
      $region45: #{tpu_custom_call.1} parent=5 // pred_check
        %p302 = pneg %p301
      $region46: #{tpu_custom_call.1} parent=5 // pred_check_branch
        %304 = sbr.rel (%p302) target = $region48
      $region47: #{tpu_custom_call.1} parent=5 // pred_region
        // Predicated region
        $region49: #{tpu_custom_call.1} parent=47 // pred_check
          %p305 = pneg %p42
        $region50: #{tpu_custom_call.1} parent=47 // pred_check_branch
          %307 = sbr.rel (%p305) target = $region52
        $region51: #{tpu_custom_call.1} parent=47 // pred_region
          %s308 = sand.u32 %s32, 1
          %s309 = scalar_lea.sflag [#allocation3], %s308
          %s310 = sand.u32 %s32, 1
          %s311 = smul.addr %s310, 64
          %s312 = scalar_lea.vmem [#allocation2], %s311
          %s314 = ssub.s32 1024, 1024
          %315 = vsyncadd %s309, %s314
          %s316 = smul.addr %s22, 8
          %s317 = smul.addr %s316, 128
          %s318 = scalar_lea.hbm %s0, %s317
          %s319 = sshll.u32 %s312, 4
          %s320 = int_to_ptr.vmem [resolvable:$true] %s319
          %325 = dma.hbm_to_vmem [thread:$0]  %s318, 1024, %s320, %s309, 256, 256, 16
        $region52: #{tpu_custom_call.1} parent=47 // pred_fallthru
          _
      $region48: #{tpu_custom_call.1} parent=5 // pred_fallthru
        _
      %p326 = scmp.le.s32.totalorder 1, %s22
      %p327 = scmp.lt.s32.totalorder %s22, 3
      %p328 = pnand %p326, %p327
      %p329 = pneg %p328
      // Predicated region
      $region53: #{tpu_custom_call.1} parent=5 // pred_check
        _
      $region54: #{tpu_custom_call.1} parent=5 // pred_check_branch
        %331 = sbr.rel (%p328) target = $region56
      $region55: #{tpu_custom_call.1} parent=5 // pred_region
        %s332 = ssub.s32 %s22, 1
        %s333 = sand.u32 %s35, 1
        %s334 = scalar_lea.sflag [#allocation3], %s333
        %s335 = sand.u32 %s35, 1
        %s336 = smul.addr %s335, 64
        %s337 = scalar_lea.vmem [#allocation2], %s336
        // Predicated region
        $region57: #{tpu_custom_call.1} parent=55 // pred_check
          %p338 = pneg %p48
        $region58: #{tpu_custom_call.1} parent=55 // pred_check_branch
          %340 = sbr.rel (%p338) target = $region60
        $region59: #{tpu_custom_call.1} parent=55 // pred_region
          %341 = dma.done %s334, 1024
        $region60: #{tpu_custom_call.1} parent=55 // pred_fallthru
          _
        // Predicated region
        $region61: #{tpu_custom_call.1} parent=55 // pred_check
          %p342 = pneg %p111
        $region62: #{tpu_custom_call.1} parent=55 // pred_check_branch
          %344 = sbr.rel (%p342) target = $region64
        $region63: #{tpu_custom_call.1} parent=55 // pred_region
          %345 = dma.done [#allocation6], 6400
        $region64: #{tpu_custom_call.1} parent=55 // pred_fallthru
          _
        // Predicated region
        $region65: #{tpu_custom_call.1} parent=55 // pred_check
          %p346 = pneg %p195
        $region66: #{tpu_custom_call.1} parent=55 // pred_check_branch
          %348 = sbr.rel (%p346) target = $region68
        $region67: #{tpu_custom_call.1} parent=55 // pred_region
          %349 = dma.done [#allocation6], 12800
        $region68: #{tpu_custom_call.1} parent=55 // pred_fallthru
          _
        %s350 = sand.u32 %s35, 1
        %s351 = scalar_lea.sflag [#allocation3], %s350
        %s352 = sand.u32 %s35, 1
        %s353 = smul.addr %s352, 64
        %s354 = scalar_lea.vmem [#allocation2], %s353
        %p355 = pneg %p48
        %p356 = pneg %p45
        %p357 = pneg %p69
        %p358 = pneg %p66
        %p359 = pneg %p90
        %p360 = pneg %p87
        %p361 = pneg %p111
        %p362 = pneg %p108
        %p363 = pneg %p132
        %p364 = pneg %p129
        %p365 = pneg %p153
        %p366 = pneg %p150
        %p367 = pneg %p174
        %p368 = pneg %p171
        %p369 = pneg %p195
        %p370 = pneg %p192
        %p371 = pneg %p216
        %p372 = pneg %p213
        %p373 = pneg %p242
        %p374 = pneg %p239
        %s375 = sand.u32 %s229, 1
        %s376 = scalar_lea.sflag [#allocation4], %s375
        %s377 = sand.u32 %s229, 1
        %s378 = smul.addr %s377, 64
        %s379 = scalar_lea.vmem [#allocation8], %s378
        %v380 = vld [vmem:[%s337] sm:$0xff]
        %v381 = vld [vmem:[%s337 + $0x8] sm:$0xff]
        %v382 = vld [vmem:[%s337 + $0x10] sm:$0xff]
        %v383 = vld [vmem:[%s337 + $0x18] sm:$0xff]
        %v384 = vld [vmem:[%s337 + $0x20] sm:$0xff]
        %v385 = vld [vmem:[%s337 + $0x28] sm:$0xff]
        %v386 = vld [vmem:[%s337 + $0x30] sm:$0xff]
        %v387 = vld [vmem:[%s337 + $0x38] sm:$0xff]
        %v388 = vld [vmem:[%s1] sm:$0xff]
        %v389 = vld [vmem:[%s2] sm:$0xff]
        %391 = vset.pattern.permute.xlu0 0
        %392 = vperm.xlu0 %391, %v389
        %v393 = vpop.permute.xlu0 %392
        %vm395 = vcmask 261120
        %v397 = vsel %vm395, %v388, 0
        %399 = vmatprep.subr.mxu0 0.0
        %400 = vmatpush1.msra.mxu0 0.0
        %401 = vmatprep.subr.mxu0 0.0
        %402 = vmatpush1.msra.mxu0 0.0
        %403 = vmatprep.subr.mxu0 0.0
        %404 = vmatpush1.msra.mxu0 0.0
        %405 = vmatprep.subr.mxu0 0.0
        %406 = vmatpush1.msra.mxu0 0.0
        %407 = vmatprep.subr.mxu0 0.0
        %408 = vmatpush1.msra.mxu0 0.0
        %409 = vmatprep.subr.mxu0 0.0
        %410 = vmatpush1.msra.mxu0 0.0
        %411 = vmatprep.subr.mxu0 0.0
        %412 = vmatpush1.msra.mxu0 0.0
        %413 = vmatprep.subr.mxu0 0.0
        %414 = vmatpush1.msra.mxu0 0.0
        %415 = vmatprep.subr.mxu0 0.0
        %416 = vmatpush1.msra.mxu0 0.0
        %417 = vmatprep.subr.mxu0 0.0
        %418 = vmatpush1.msra.mxu0 0.0
        %419 = vmatprep.subr.mxu0 0.0
        %420 = vmatpush1.msra.mxu0 0.0
        %421 = vmatprep.subr.mxu0 0.0
        %422 = vmatpush1.msra.mxu0 0.0
        %423 = vmatprep.subr.mxu0 %v387
        %424 = vmatpush1.msra.mxu0 %v386
        %425 = vmatprep.subr.mxu0 %v385
        %426 = vmatpush1.msra.mxu0 %v384
        %427 = vmatprep.subr.mxu0 %v383
        %428 = vmatpush1.msra.mxu0 %v382
        %429 = vmatprep.subr.mxu0 %v381
        %430 = vmatpush1.msra.mxu0 %v380
        %431 = vmatprep.subr.mxu0 0.0
        %432 = vmatpush2.msra.mxu0 0.0
        %433 = vmatprep.subr.mxu0 0.0
        %434 = vmatpush2.msra.mxu0 0.0
        %435 = vmatprep.subr.mxu0 0.0
        %436 = vmatpush2.msra.mxu0 0.0
        %437 = vmatprep.subr.mxu0 0.0
        %438 = vmatpush2.msra.mxu0 0.0
        %439 = vmatprep.subr.mxu0 0.0
        %440 = vmatpush2.msra.mxu0 0.0
        %441 = vmatprep.subr.mxu0 0.0
        %442 = vmatpush2.msra.mxu0 0.0
        %443 = vmatprep.subr.mxu0 0.0
        %444 = vmatpush2.msra.mxu0 0.0
        %445 = vmatprep.subr.mxu0 0.0
        %446 = vmatpush2.msra.mxu0 0.0
        %447 = vmatprep.subr.mxu0 0.0
        %448 = vmatpush2.msra.mxu0 0.0
        %449 = vmatprep.subr.mxu0 0.0
        %450 = vmatpush2.msra.mxu0 0.0
        %451 = vmatprep.subr.mxu0 0.0
        %452 = vmatpush2.msra.mxu0 0.0
        %453 = vmatprep.subr.mxu0 0.0
        %454 = vmatpush2.msra.mxu0 0.0
        %455 = vmatprep.subr.mxu0 0.0
        %456 = vmatpush2.msra.mxu0 0.0
        %457 = vmatprep.subr.mxu0 0.0
        %458 = vmatpush2.msra.mxu0 0.0
        %459 = vmatprep.subr.mxu0 0.0
        %460 = vmatpush2.msra.mxu0 0.0
        %461 = vmatprep.subr.mxu0 0.0
        %462 = vmatpush2.msra.mxu0 0.0
        %463 = vmatprep.mubr.f32.mxu0 0.0
        %464 = vmatmul.mubr.f32.gmra.mxu0 %v397
        %v465 = vpop.f32.mrf.mxu0
        %v466 = vadd.f32 %v393, %v465
        %v467 = vpop.f32.mrf.mxu0
        %v468 = vadd.f32 %v393, %v467
        %469 = vdwg.mxu0
        %v470 = vxor.u32 %v466, 2147483648
        %v471 = vxor.u32 %v468, 2147483648
        %v472 = vmul.f32 %v470, 1.442695
        %v473 = vpow.pop %v472
        %v474 = vmul.f32 %v471, 1.442695
        %v475 = vpow.pop %v474
        %v476 = vadd.f32 %v473, 1.0
        %v477 = vadd.f32 %v475, 1.0
        %v478 = vrcp.pop %v476
        %v479 = vmul.f32 1.0, %v478
        %v480 = vrcp.pop %v477
        %v481 = vmul.f32 1.0, %v480
        %v482 = vmul.f32 %v466, %v479
        %v483 = vmul.f32 %v468, %v481
        %s484 = scalar_lea.vmem [#allocation5], 192
        %v485 = vld [vmem:[%s484] sm:$0xff]
        %v486 = vld [vmem:[%s484 + $0x8] sm:$0xff]
        %v487 = vmul.f32 %v482, %v485
        %v488 = vmul.f32 %v483, %v486
        %v489 = vld [vmem:[%s4] sm:$0xff]
        %491 = vset.pattern.permute.xlu0 0
        %492 = vperm.xlu0 %491, %v489
        %v493 = vpop.permute.xlu0 %492
        %v495 = vadd.f32 %v487, %v493
        %v496 = vadd.f32 %v488, %v493
        %497 = vrot.lane.b32.xlu0 %v482, 34
        %v498 = vpop.permute.xlu0 %497
        %499 = vrot.lane.b32.xlu0 %v483, 34
        %v500 = vpop.permute.xlu0 %499
        %v501 = vlaneseq
        %v502 = vand.u32 %v501, 127
        %vm503 = vcmp.lt.s32.totalorder %v502, 34
        %v504 = vsel %vm503, %v498, %v500
        %v505 = vsel %vm503, %v500, %v498
        %v506 = vld [vmem:[#allocation5] sm:$0xff]
        %v507 = vld [vmem:[#allocation5 + $0x8] sm:$0xff]
        %v508 = vmul.f32 %v505, %v506
        %v509 = vmul.f32 %v504, %v507
        %v510 = vadd.f32 %v495, %v508
        %v511 = vadd.f32 %v496, %v509
        %512 = vrot.lane.b32.xlu0 %v482, 33
        %v513 = vpop.permute.xlu0 %512
        %514 = vrot.lane.b32.xlu0 %v483, 33
        %v515 = vpop.permute.xlu0 %514
        %vm516 = vcmp.lt.s32.totalorder %v502, 33
        %v517 = vsel %vm516, %v513, %v515
        %v518 = vsel %vm516, %v515, %v513
        %s519 = scalar_lea.vmem [#allocation5], 16
        %v520 = vld [vmem:[%s519] sm:$0xff]
        %v521 = vld [vmem:[%s519 + $0x8] sm:$0xff]
        %v522 = vmul.f32 %v518, %v520
        %v523 = vmul.f32 %v517, %v521
        %v524 = vadd.f32 %v510, %v522
        %v525 = vadd.f32 %v511, %v523
        %526 = vrot.lane.b32.xlu0 %v482, 32
        %v527 = vpop.permute.xlu0 %526
        %528 = vrot.lane.b32.xlu0 %v483, 32
        %v529 = vpop.permute.xlu0 %528
        %vm530 = vcmp.lt.s32.totalorder %v502, 32
        %v531 = vsel %vm530, %v527, %v529
        %v532 = vsel %vm530, %v529, %v527
        %s533 = scalar_lea.vmem [#allocation5], 32
        %v534 = vld [vmem:[%s533] sm:$0xff]
        %v535 = vld [vmem:[%s533 + $0x8] sm:$0xff]
        %v536 = vmul.f32 %v532, %v534
        %v537 = vmul.f32 %v531, %v535
        %v538 = vadd.f32 %v524, %v536
        %v539 = vadd.f32 %v525, %v537
        %540 = vrot.lane.b32.xlu0 %v482, 31
        %v541 = vpop.permute.xlu0 %540
        %542 = vrot.lane.b32.xlu0 %v483, 31
        %v543 = vpop.permute.xlu0 %542
        %vm544 = vcmp.lt.s32.totalorder %v502, 31
        %v545 = vsel %vm544, %v541, %v543
        %v546 = vsel %vm544, %v543, %v541
        %s547 = scalar_lea.vmem [#allocation5], 48
        %v548 = vld [vmem:[%s547] sm:$0xff]
        %v549 = vld [vmem:[%s547 + $0x8] sm:$0xff]
        %v550 = vmul.f32 %v546, %v548
        %v551 = vmul.f32 %v545, %v549
        %v552 = vadd.f32 %v538, %v550
        %v553 = vadd.f32 %v539, %v551
        %554 = vrot.lane.b32.xlu0 %v482, 30
        %v555 = vpop.permute.xlu0 %554
        %556 = vrot.lane.b32.xlu0 %v483, 30
        %v557 = vpop.permute.xlu0 %556
        %vm558 = vcmp.lt.s32.totalorder %v502, 30
        %v559 = vsel %vm558, %v555, %v557
        %v560 = vsel %vm558, %v557, %v555
        %s561 = scalar_lea.vmem [#allocation5], 64
        %v562 = vld [vmem:[%s561] sm:$0xff]
        %v563 = vld [vmem:[%s561 + $0x8] sm:$0xff]
        %v564 = vmul.f32 %v560, %v562
        %v565 = vmul.f32 %v559, %v563
        %v566 = vadd.f32 %v552, %v564
        %v567 = vadd.f32 %v553, %v565
        %568 = vrot.lane.b32.xlu0 %v482, 18
        %v569 = vpop.permute.xlu0 %568
        %570 = vrot.lane.b32.xlu0 %v483, 18
        %v571 = vpop.permute.xlu0 %570
        %vm572 = vcmp.lt.s32.totalorder %v502, 18
        %v573 = vsel %vm572, %v569, %v571
        %v574 = vsel %vm572, %v571, %v569
        %s575 = scalar_lea.vmem [#allocation5], 80
        %v576 = vld [vmem:[%s575] sm:$0xff]
        %v577 = vld [vmem:[%s575 + $0x8] sm:$0xff]
        %v578 = vmul.f32 %v574, %v576
        %v579 = vmul.f32 %v573, %v577
        %v580 = vadd.f32 %v566, %v578
        %v581 = vadd.f32 %v567, %v579
        %582 = vrot.lane.b32.xlu0 %v482, 17
        %v583 = vpop.permute.xlu0 %582
        %584 = vrot.lane.b32.xlu0 %v483, 17
        %v585 = vpop.permute.xlu0 %584
        %vm586 = vcmp.lt.s32.totalorder %v502, 17
        %v587 = vsel %vm586, %v583, %v585
        %v588 = vsel %vm586, %v585, %v583
        %s589 = scalar_lea.vmem [#allocation5], 96
        %v590 = vld [vmem:[%s589] sm:$0xff]
        %v591 = vld [vmem:[%s589 + $0x8] sm:$0xff]
        %v592 = vmul.f32 %v588, %v590
        %v593 = vmul.f32 %v587, %v591
        %v594 = vadd.f32 %v580, %v592
        %v595 = vadd.f32 %v581, %v593
        %596 = vrot.lane.b32.xlu0 %v482, 16
        %v597 = vpop.permute.xlu0 %596
        %598 = vrot.lane.b32.xlu0 %v483, 16
        %v599 = vpop.permute.xlu0 %598
        %vm600 = vcmp.lt.s32.totalorder %v502, 16
        %v601 = vsel %vm600, %v597, %v599
        %v602 = vsel %vm600, %v599, %v597
        %s603 = scalar_lea.vmem [#allocation5], 112
        %v604 = vld [vmem:[%s603] sm:$0xff]
        %v605 = vld [vmem:[%s603 + $0x8] sm:$0xff]
        %v606 = vmul.f32 %v602, %v604
        %v607 = vmul.f32 %v601, %v605
        %v608 = vadd.f32 %v594, %v606
        %v609 = vadd.f32 %v595, %v607
        %610 = vrot.lane.b32.xlu0 %v482, 15
        %v611 = vpop.permute.xlu0 %610
        %612 = vrot.lane.b32.xlu0 %v483, 15
        %v613 = vpop.permute.xlu0 %612
        %vm614 = vcmp.lt.s32.totalorder %v502, 15
        %v615 = vsel %vm614, %v611, %v613
        %v616 = vsel %vm614, %v613, %v611
        %s617 = scalar_lea.vmem [#allocation5], 128
        %v618 = vld [vmem:[%s617] sm:$0xff]
        %v619 = vld [vmem:[%s617 + $0x8] sm:$0xff]
        %v620 = vmul.f32 %v616, %v618
        %v621 = vmul.f32 %v615, %v619
        %v622 = vadd.f32 %v608, %v620
        %v623 = vadd.f32 %v609, %v621
        %624 = vrot.lane.b32.xlu0 %v482, 14
        %v625 = vpop.permute.xlu0 %624
        %626 = vrot.lane.b32.xlu0 %v483, 14
        %v627 = vpop.permute.xlu0 %626
        %vm628 = vcmp.lt.s32.totalorder %v502, 14
        %v629 = vsel %vm628, %v625, %v627
        %v630 = vsel %vm628, %v627, %v625
        %s631 = scalar_lea.vmem [#allocation5], 144
        %v632 = vld [vmem:[%s631] sm:$0xff]
        %v633 = vld [vmem:[%s631 + $0x8] sm:$0xff]
        %v634 = vmul.f32 %v630, %v632
        %v635 = vmul.f32 %v629, %v633
        %v636 = vadd.f32 %v622, %v634
        %v637 = vadd.f32 %v623, %v635
        %638 = vrot.lane.b32.xlu0 %v482, 2
        %v639 = vpop.permute.xlu0 %638
        %640 = vrot.lane.b32.xlu0 %v483, 2
        %v641 = vpop.permute.xlu0 %640
        %vm642 = vcmp.lt.s32.totalorder %v502, 2
        %v643 = vsel %vm642, %v639, %v641
        %v644 = vsel %vm642, %v641, %v639
        %s645 = scalar_lea.vmem [#allocation5], 160
        %v646 = vld [vmem:[%s645] sm:$0xff]
        %v647 = vld [vmem:[%s645 + $0x8] sm:$0xff]
        %v648 = vmul.f32 %v644, %v646
        %v649 = vmul.f32 %v643, %v647
        %v650 = vadd.f32 %v636, %v648
        %v651 = vadd.f32 %v637, %v649
        %652 = vrot.lane.b32.xlu0 %v482, 1
        %v653 = vpop.permute.xlu0 %652
        %654 = vrot.lane.b32.xlu0 %v483, 1
        %v655 = vpop.permute.xlu0 %654
        %vm656 = vcmp.lt.s32.totalorder %v502, 1
        %v657 = vsel %vm656, %v653, %v655
        %v658 = vsel %vm656, %v655, %v653
        %s659 = scalar_lea.vmem [#allocation5], 176
        %v660 = vld [vmem:[%s659] sm:$0xff]
        %v661 = vld [vmem:[%s659 + $0x8] sm:$0xff]
        %v662 = vmul.f32 %v658, %v660
        %v663 = vmul.f32 %v657, %v661
        %v664 = vadd.f32 %v650, %v662
        %v665 = vadd.f32 %v651, %v663
        %666 = vrot.lane.b32.xlu0 %v482, 127
        %v667 = vpop.permute.xlu0 %666
        %668 = vrot.lane.b32.xlu0 %v483, 127
        %v669 = vpop.permute.xlu0 %668
        %vm670 = vcmp.lt.s32.totalorder %v502, 127
        %v671 = vsel %vm670, %v667, %v669
        %v672 = vsel %vm670, %v669, %v667
        %s673 = scalar_lea.vmem [#allocation5], 208
        %v674 = vld [vmem:[%s673] sm:$0xff]
        %v675 = vld [vmem:[%s673 + $0x8] sm:$0xff]
        %v676 = vmul.f32 %v671, %v674
        %v677 = vmul.f32 %v672, %v675
        %v678 = vadd.f32 %v664, %v676
        %v679 = vadd.f32 %v665, %v677
        %680 = vrot.lane.b32.xlu0 %v482, 126
        %v681 = vpop.permute.xlu0 %680
        %682 = vrot.lane.b32.xlu0 %v483, 126
        %v683 = vpop.permute.xlu0 %682
        %vm684 = vcmp.lt.s32.totalorder %v502, 126
        %v685 = vsel %vm684, %v681, %v683
        %v686 = vsel %vm684, %v683, %v681
        %s687 = scalar_lea.vmem [#allocation5], 224
        %v688 = vld [vmem:[%s687] sm:$0xff]
        %v689 = vld [vmem:[%s687 + $0x8] sm:$0xff]
        %v690 = vmul.f32 %v685, %v688
        %v691 = vmul.f32 %v686, %v689
        %v692 = vadd.f32 %v678, %v690
        %v693 = vadd.f32 %v679, %v691
        %694 = vrot.lane.b32.xlu0 %v482, 114
        %v695 = vpop.permute.xlu0 %694
        %696 = vrot.lane.b32.xlu0 %v483, 114
        %v697 = vpop.permute.xlu0 %696
        %vm698 = vcmp.lt.s32.totalorder %v502, 114
        %v699 = vsel %vm698, %v695, %v697
        %v700 = vsel %vm698, %v697, %v695
        %s701 = scalar_lea.vmem [#allocation5], 240
        %v702 = vld [vmem:[%s701] sm:$0xff]
        %v703 = vld [vmem:[%s701 + $0x8] sm:$0xff]
        %v704 = vmul.f32 %v699, %v702
        %v705 = vmul.f32 %v700, %v703
        %v706 = vadd.f32 %v692, %v704
        %v707 = vadd.f32 %v693, %v705
        %708 = vrot.lane.b32.xlu0 %v482, 113
        %v709 = vpop.permute.xlu0 %708
        %710 = vrot.lane.b32.xlu0 %v483, 113
        %v711 = vpop.permute.xlu0 %710
        %vm712 = vcmp.lt.s32.totalorder %v502, 113
        %v713 = vsel %vm712, %v709, %v711
        %v714 = vsel %vm712, %v711, %v709
        %s715 = scalar_lea.vmem [#allocation5], 256
        %v716 = vld [vmem:[%s715] sm:$0xff]
        %v717 = vld [vmem:[%s715 + $0x8] sm:$0xff]
        %v718 = vmul.f32 %v713, %v716
        %v719 = vmul.f32 %v714, %v717
        %v720 = vadd.f32 %v706, %v718
        %v721 = vadd.f32 %v707, %v719
        %722 = vrot.lane.b32.xlu0 %v482, 112
        %v723 = vpop.permute.xlu0 %722
        %724 = vrot.lane.b32.xlu0 %v483, 112
        %v725 = vpop.permute.xlu0 %724
        %vm726 = vcmp.lt.s32.totalorder %v502, 112
        %v727 = vsel %vm726, %v723, %v725
        %v728 = vsel %vm726, %v725, %v723
        %s729 = scalar_lea.vmem [#allocation5], 272
        %v730 = vld [vmem:[%s729] sm:$0xff]
        %v731 = vld [vmem:[%s729 + $0x8] sm:$0xff]
        %v732 = vmul.f32 %v727, %v730
        %v733 = vmul.f32 %v728, %v731
        %v734 = vadd.f32 %v720, %v732
        %v735 = vadd.f32 %v721, %v733
        %736 = vrot.lane.b32.xlu0 %v482, 111
        %v737 = vpop.permute.xlu0 %736
        %738 = vrot.lane.b32.xlu0 %v483, 111
        %v739 = vpop.permute.xlu0 %738
        %vm740 = vcmp.lt.s32.totalorder %v502, 111
        %v741 = vsel %vm740, %v737, %v739
        %v742 = vsel %vm740, %v739, %v737
        %s743 = scalar_lea.vmem [#allocation5], 288
        %v744 = vld [vmem:[%s743] sm:$0xff]
        %v745 = vld [vmem:[%s743 + $0x8] sm:$0xff]
        %v746 = vmul.f32 %v741, %v744
        %v747 = vmul.f32 %v742, %v745
        %v748 = vadd.f32 %v734, %v746
        %v749 = vadd.f32 %v735, %v747
        %750 = vrot.lane.b32.xlu0 %v482, 110
        %v751 = vpop.permute.xlu0 %750
        %752 = vrot.lane.b32.xlu0 %v483, 110
        %v753 = vpop.permute.xlu0 %752
        %vm754 = vcmp.lt.s32.totalorder %v502, 110
        %v755 = vsel %vm754, %v751, %v753
        %v756 = vsel %vm754, %v753, %v751
        %s757 = scalar_lea.vmem [#allocation5], 304
        %v758 = vld [vmem:[%s757] sm:$0xff]
        %v759 = vld [vmem:[%s757 + $0x8] sm:$0xff]
        %v760 = vmul.f32 %v755, %v758
        %v761 = vmul.f32 %v756, %v759
        %v762 = vadd.f32 %v748, %v760
        %v763 = vadd.f32 %v749, %v761
        %764 = vrot.lane.b32.xlu0 %v482, 98
        %v765 = vpop.permute.xlu0 %764
        %766 = vrot.lane.b32.xlu0 %v483, 98
        %v767 = vpop.permute.xlu0 %766
        %vm768 = vcmp.lt.s32.totalorder %v502, 98
        %v769 = vsel %vm768, %v765, %v767
        %v770 = vsel %vm768, %v767, %v765
        %s771 = scalar_lea.vmem [#allocation5], 320
        %v772 = vld [vmem:[%s771] sm:$0xff]
        %v773 = vld [vmem:[%s771 + $0x8] sm:$0xff]
        %v774 = vmul.f32 %v769, %v772
        %v775 = vmul.f32 %v770, %v773
        %v776 = vadd.f32 %v762, %v774
        %v777 = vadd.f32 %v763, %v775
        %778 = vrot.lane.b32.xlu0 %v482, 97
        %v779 = vpop.permute.xlu0 %778
        %780 = vrot.lane.b32.xlu0 %v483, 97
        %v781 = vpop.permute.xlu0 %780
        %vm782 = vcmp.lt.s32.totalorder %v502, 97
        %v783 = vsel %vm782, %v779, %v781
        %v784 = vsel %vm782, %v781, %v779
        %s785 = scalar_lea.vmem [#allocation5], 336
        %v786 = vld [vmem:[%s785] sm:$0xff]
        %v787 = vld [vmem:[%s785 + $0x8] sm:$0xff]
        %v788 = vmul.f32 %v783, %v786
        %v789 = vmul.f32 %v784, %v787
        %v790 = vadd.f32 %v776, %v788
        %v791 = vadd.f32 %v777, %v789
        %792 = vrot.lane.b32.xlu0 %v482, 96
        %v793 = vpop.permute.xlu0 %792
        %794 = vrot.lane.b32.xlu0 %v483, 96
        %v795 = vpop.permute.xlu0 %794
        %vm796 = vcmp.lt.s32.totalorder %v502, 96
        %v797 = vsel %vm796, %v793, %v795
        %v798 = vsel %vm796, %v795, %v793
        %s799 = scalar_lea.vmem [#allocation5], 352
        %v800 = vld [vmem:[%s799] sm:$0xff]
        %v801 = vld [vmem:[%s799 + $0x8] sm:$0xff]
        %v802 = vmul.f32 %v797, %v800
        %v803 = vmul.f32 %v798, %v801
        %v804 = vadd.f32 %v790, %v802
        %v805 = vadd.f32 %v791, %v803
        %806 = vrot.lane.b32.xlu0 %v482, 95
        %v807 = vpop.permute.xlu0 %806
        %808 = vrot.lane.b32.xlu0 %v483, 95
        %v809 = vpop.permute.xlu0 %808
        %vm810 = vcmp.lt.s32.totalorder %v502, 95
        %v811 = vsel %vm810, %v807, %v809
        %v812 = vsel %vm810, %v809, %v807
        %s813 = scalar_lea.vmem [#allocation5], 368
        %v814 = vld [vmem:[%s813] sm:$0xff]
        %v815 = vld [vmem:[%s813 + $0x8] sm:$0xff]
        %v816 = vmul.f32 %v811, %v814
        %v817 = vmul.f32 %v812, %v815
        %v818 = vadd.f32 %v804, %v816
        %v819 = vadd.f32 %v805, %v817
        %820 = vrot.lane.b32.xlu0 %v482, 94
        %v821 = vpop.permute.xlu0 %820
        %822 = vrot.lane.b32.xlu0 %v483, 94
        %v823 = vpop.permute.xlu0 %822
        %vm824 = vcmp.lt.s32.totalorder %v502, 94
        %v825 = vsel %vm824, %v821, %v823
        %v826 = vsel %vm824, %v823, %v821
        %s827 = scalar_lea.vmem [#allocation5], 384
        %v828 = vld [vmem:[%s827] sm:$0xff]
        %v829 = vld [vmem:[%s827 + $0x8] sm:$0xff]
        %v830 = vmul.f32 %v825, %v828
        %v831 = vmul.f32 %v826, %v829
        %v832 = vadd.f32 %v818, %v830
        %v833 = vadd.f32 %v819, %v831
        %v834 = vxor.u32 %v832, 2147483648
        %v835 = vxor.u32 %v833, 2147483648
        %v836 = vmul.f32 %v834, 1.442695
        %v837 = vpow.pop %v836
        %v838 = vmul.f32 %v835, 1.442695
        %v839 = vpow.pop %v838
        %v840 = vadd.f32 %v837, 1.0
        %v841 = vadd.f32 %v839, 1.0
        %v842 = vrcp.pop %v840
        %v843 = vmul.f32 1.0, %v842
        %v844 = vrcp.pop %v841
        %v845 = vmul.f32 1.0, %v844
        %v846 = vmul.f32 %v832, %v843
        %v847 = vmul.f32 %v833, %v845
        %v848 = vld [vmem:[%s5] sm:$0xff]
        %v849 = vld [vmem:[%s5 + $0x8] sm:$0xff]
        %v850 = vld [vmem:[%s6] sm:$0xff]
        %v851 = vld [vmem:[%s6 + $0x8] sm:$0xff]
        %853 = vset.pattern.permute.xlu0 0
        %854 = vperm.xlu0 %853, %v850
        %v855 = vpop.permute.xlu0 %854
        %858 = vset.pattern.permute.xlu0 0
        %859 = vperm.xlu0 %858, %v851
        %v860 = vpop.permute.xlu0 %859
        %vm862 = vcmask 130048
        %v864 = vsel %vm862, %v848, 0
        %v867 = vsel %vm862, %v849, 0
        %869 = vmatprep.subr.mxu0 0.0
        %870 = vmatpush1.msra.mxu0 0.0
        %871 = vmatprep.subr.mxu0 0.0
        %872 = vmatpush1.msra.mxu0 0.0
        %873 = vmatprep.subr.mxu0 0.0
        %874 = vmatpush1.msra.mxu0 0.0
        %875 = vmatprep.subr.mxu0 0.0
        %876 = vmatpush1.msra.mxu0 0.0
        %877 = vmatprep.subr.mxu0 0.0
        %878 = vmatpush1.msra.mxu0 0.0
        %879 = vmatprep.subr.mxu0 0.0
        %880 = vmatpush1.msra.mxu0 0.0
        %881 = vmatprep.subr.mxu0 0.0
        %882 = vmatpush1.msra.mxu0 0.0
        %883 = vmatprep.subr.mxu0 0.0
        %884 = vmatpush1.msra.mxu0 0.0
        %885 = vmatprep.subr.mxu0 0.0
        %886 = vmatpush1.msra.mxu0 0.0
        %887 = vmatprep.subr.mxu0 0.0
        %888 = vmatpush1.msra.mxu0 0.0
        %889 = vmatprep.subr.mxu0 0.0
        %890 = vmatpush1.msra.mxu0 0.0
        %891 = vmatprep.subr.mxu0 0.0
        %892 = vmatpush1.msra.mxu0 0.0
        %893 = vmatprep.subr.mxu0 0.0
        %894 = vmatpush1.msra.mxu0 0.0
        %895 = vmatprep.subr.mxu0 0.0
        %896 = vmatpush1.msra.mxu0 0.0
        %897 = vmatprep.subr.mxu0 %v847
        %898 = vmatpush1.msra.mxu0 %v846
        %899 = vmatprep.subr.mxu0 %v483
        %900 = vmatpush1.msra.mxu0 %v482
        %901 = vmatprep.subr.mxu0 0.0
        %902 = vmatpush2.msra.mxu0 0.0
        %903 = vmatprep.subr.mxu0 0.0
        %904 = vmatpush2.msra.mxu0 0.0
        %905 = vmatprep.subr.mxu0 0.0
        %906 = vmatpush2.msra.mxu0 0.0
        %907 = vmatprep.subr.mxu0 0.0
        %908 = vmatpush2.msra.mxu0 0.0
        %909 = vmatprep.subr.mxu0 0.0
        %910 = vmatpush2.msra.mxu0 0.0
        %911 = vmatprep.subr.mxu0 0.0
        %912 = vmatpush2.msra.mxu0 0.0
        %913 = vmatprep.subr.mxu0 0.0
        %914 = vmatpush2.msra.mxu0 0.0
        %915 = vmatprep.subr.mxu0 0.0
        %916 = vmatpush2.msra.mxu0 0.0
        %917 = vmatprep.subr.mxu0 0.0
        %918 = vmatpush2.msra.mxu0 0.0
        %919 = vmatprep.subr.mxu0 0.0
        %920 = vmatpush2.msra.mxu0 0.0
        %921 = vmatprep.subr.mxu0 0.0
        %922 = vmatpush2.msra.mxu0 0.0
        %923 = vmatprep.subr.mxu0 0.0
        %924 = vmatpush2.msra.mxu0 0.0
        %925 = vmatprep.subr.mxu0 0.0
        %926 = vmatpush2.msra.mxu0 0.0
        %927 = vmatprep.subr.mxu0 0.0
        %928 = vmatpush2.msra.mxu0 0.0
        %929 = vmatprep.subr.mxu0 0.0
        %930 = vmatpush2.msra.mxu0 0.0
        %931 = vmatprep.subr.mxu0 0.0
        %932 = vmatpush2.msra.mxu0 0.0
        %933 = vmatprep.mubr.f32.mxu0 0.0
        %934 = vmatmul.mubr.f32.gmra.mxu0 %v864
        %v935 = vpop.f32.mrf.mxu0
        %v936 = vadd.f32 %v855, %v935
        %v937 = vpop.f32.mrf.mxu0
        %v938 = vadd.f32 %v855, %v937
        %939 = vmatprep.mubr.f32.mxu0 0.0
        %940 = vmatmul.mubr.f32.gmra.mxu0 %v867
        %v941 = vpop.f32.mrf.mxu0
        %v942 = vadd.f32 %v860, %v941
        %v943 = vpop.f32.mrf.mxu0
        %v944 = vadd.f32 %v860, %v943
        %945 = vdwg.mxu0
        %s946 = scalar_lea.vmem [#allocation7], 384
        %v947 = vld [vmem:[%s946] sm:$0xff]
        %v948 = vld [vmem:[%s946 + $0x8] sm:$0xff]
        %v949 = vld [vmem:[%s946 + $0x10] sm:$0xff]
        %v950 = vld [vmem:[%s946 + $0x18] sm:$0xff]
        %v951 = vmul.f32 %v936, %v947
        %v952 = vmul.f32 %v938, %v948
        %v953 = vmul.f32 %v942, %v949
        %v954 = vmul.f32 %v944, %v950
        %v955 = vld [vmem:[%s8] sm:$0xff]
        %v956 = vld [vmem:[%s8 + $0x8] sm:$0xff]
        %958 = vset.pattern.permute.xlu0 0
        %959 = vperm.xlu0 %958, %v955
        %v960 = vpop.permute.xlu0 %959
        %963 = vset.pattern.permute.xlu0 0
        %964 = vperm.xlu0 %963, %v956
        %v965 = vpop.permute.xlu0 %964
        %v967 = vadd.f32 %v951, %v960
        %v968 = vadd.f32 %v952, %v960
        %v969 = vadd.f32 %v953, %v965
        %v970 = vadd.f32 %v954, %v965
        %971 = vrot.lane.b32.xlu0 %v936, 34
        %v972 = vpop.permute.xlu0 %971
        %973 = vrot.lane.b32.xlu0 %v942, 34
        %v974 = vpop.permute.xlu0 %973
        %975 = vrot.lane.b32.xlu0 %v938, 34
        %v976 = vpop.permute.xlu0 %975
        %977 = vrot.lane.b32.xlu0 %v944, 34
        %v978 = vpop.permute.xlu0 %977
        %v979 = vsel %vm503, %v972, %v976
        %v980 = vsel %vm503, %v974, %v978
        %v981 = vsel %vm503, %v976, %v972
        %v982 = vsel %vm503, %v978, %v974
        %v983 = vld [vmem:[#allocation7] sm:$0xff]
        %v984 = vld [vmem:[#allocation7 + $0x8] sm:$0xff]
        %v985 = vld [vmem:[#allocation7 + $0x10] sm:$0xff]
        %v986 = vld [vmem:[#allocation7 + $0x18] sm:$0xff]
        %v987 = vmul.f32 %v981, %v983
        %v988 = vmul.f32 %v979, %v984
        %v989 = vmul.f32 %v982, %v985
        %v990 = vmul.f32 %v980, %v986
        %v991 = vadd.f32 %v967, %v987
        %v992 = vadd.f32 %v968, %v988
        %v993 = vadd.f32 %v969, %v989
        %v994 = vadd.f32 %v970, %v990
        %995 = vrot.lane.b32.xlu0 %v936, 33
        %v996 = vpop.permute.xlu0 %995
        %997 = vrot.lane.b32.xlu0 %v942, 33
        %v998 = vpop.permute.xlu0 %997
        %999 = vrot.lane.b32.xlu0 %v938, 33
        %v1000 = vpop.permute.xlu0 %999
        %1001 = vrot.lane.b32.xlu0 %v944, 33
        %v1002 = vpop.permute.xlu0 %1001
        %v1003 = vsel %vm516, %v996, %v1000
        %v1004 = vsel %vm516, %v998, %v1002
        %v1005 = vsel %vm516, %v1000, %v996
        %v1006 = vsel %vm516, %v1002, %v998
        %s1007 = scalar_lea.vmem [#allocation7], 32
        %v1008 = vld [vmem:[%s1007] sm:$0xff]
        %v1009 = vld [vmem:[%s1007 + $0x8] sm:$0xff]
        %v1010 = vld [vmem:[%s1007 + $0x10] sm:$0xff]
        %v1011 = vld [vmem:[%s1007 + $0x18] sm:$0xff]
        %v1012 = vmul.f32 %v1005, %v1008
        %v1013 = vmul.f32 %v1003, %v1009
        %v1014 = vmul.f32 %v1006, %v1010
        %v1015 = vmul.f32 %v1004, %v1011
        %v1016 = vadd.f32 %v991, %v1012
        %v1017 = vadd.f32 %v992, %v1013
        %v1018 = vadd.f32 %v993, %v1014
        %v1019 = vadd.f32 %v994, %v1015
        %1020 = vrot.lane.b32.xlu0 %v936, 32
        %v1021 = vpop.permute.xlu0 %1020
        %1022 = vrot.lane.b32.xlu0 %v942, 32
        %v1023 = vpop.permute.xlu0 %1022
        %1024 = vrot.lane.b32.xlu0 %v938, 32
        %v1025 = vpop.permute.xlu0 %1024
        %1026 = vrot.lane.b32.xlu0 %v944, 32
        %v1027 = vpop.permute.xlu0 %1026
        %v1028 = vsel %vm530, %v1021, %v1025
        %v1029 = vsel %vm530, %v1023, %v1027
        %v1030 = vsel %vm530, %v1025, %v1021
        %v1031 = vsel %vm530, %v1027, %v1023
        %s1032 = scalar_lea.vmem [#allocation7], 64
        %v1033 = vld [vmem:[%s1032] sm:$0xff]
        %v1034 = vld [vmem:[%s1032 + $0x8] sm:$0xff]
        %v1035 = vld [vmem:[%s1032 + $0x10] sm:$0xff]
        %v1036 = vld [vmem:[%s1032 + $0x18] sm:$0xff]
        %v1037 = vmul.f32 %v1030, %v1033
        %v1038 = vmul.f32 %v1028, %v1034
        %v1039 = vmul.f32 %v1031, %v1035
        %v1040 = vmul.f32 %v1029, %v1036
        %v1041 = vadd.f32 %v1016, %v1037
        %v1042 = vadd.f32 %v1017, %v1038
        %v1043 = vadd.f32 %v1018, %v1039
        %v1044 = vadd.f32 %v1019, %v1040
        %1045 = vrot.lane.b32.xlu0 %v936, 31
        %v1046 = vpop.permute.xlu0 %1045
        %1047 = vrot.lane.b32.xlu0 %v942, 31
        %v1048 = vpop.permute.xlu0 %1047
        %1049 = vrot.lane.b32.xlu0 %v938, 31
        %v1050 = vpop.permute.xlu0 %1049
        %1051 = vrot.lane.b32.xlu0 %v944, 31
        %v1052 = vpop.permute.xlu0 %1051
        %v1053 = vsel %vm544, %v1046, %v1050
        %v1054 = vsel %vm544, %v1048, %v1052
        %v1055 = vsel %vm544, %v1050, %v1046
        %v1056 = vsel %vm544, %v1052, %v1048
        %s1057 = scalar_lea.vmem [#allocation7], 96
        %v1058 = vld [vmem:[%s1057] sm:$0xff]
        %v1059 = vld [vmem:[%s1057 + $0x8] sm:$0xff]
        %v1060 = vld [vmem:[%s1057 + $0x10] sm:$0xff]
        %v1061 = vld [vmem:[%s1057 + $0x18] sm:$0xff]
        %v1062 = vmul.f32 %v1055, %v1058
        %v1063 = vmul.f32 %v1053, %v1059
        %v1064 = vmul.f32 %v1056, %v1060
        %v1065 = vmul.f32 %v1054, %v1061
        %v1066 = vadd.f32 %v1041, %v1062
        %v1067 = vadd.f32 %v1042, %v1063
        %v1068 = vadd.f32 %v1043, %v1064
        %v1069 = vadd.f32 %v1044, %v1065
        %1070 = vrot.lane.b32.xlu0 %v936, 30
        %v1071 = vpop.permute.xlu0 %1070
        %1072 = vrot.lane.b32.xlu0 %v942, 30
        %v1073 = vpop.permute.xlu0 %1072
        %1074 = vrot.lane.b32.xlu0 %v938, 30
        %v1075 = vpop.permute.xlu0 %1074
        %1076 = vrot.lane.b32.xlu0 %v944, 30
        %v1077 = vpop.permute.xlu0 %1076
        %v1078 = vsel %vm558, %v1071, %v1075
        %v1079 = vsel %vm558, %v1073, %v1077
        %v1080 = vsel %vm558, %v1075, %v1071
        %v1081 = vsel %vm558, %v1077, %v1073
        %s1082 = scalar_lea.vmem [#allocation7], 128
        %v1083 = vld [vmem:[%s1082] sm:$0xff]
        %v1084 = vld [vmem:[%s1082 + $0x8] sm:$0xff]
        %v1085 = vld [vmem:[%s1082 + $0x10] sm:$0xff]
        %v1086 = vld [vmem:[%s1082 + $0x18] sm:$0xff]
        %v1087 = vmul.f32 %v1080, %v1083
        %v1088 = vmul.f32 %v1078, %v1084
        %v1089 = vmul.f32 %v1081, %v1085
        %v1090 = vmul.f32 %v1079, %v1086
        %v1091 = vadd.f32 %v1066, %v1087
        %v1092 = vadd.f32 %v1067, %v1088
        %v1093 = vadd.f32 %v1068, %v1089
        %v1094 = vadd.f32 %v1069, %v1090
        %1095 = vrot.lane.b32.xlu0 %v936, 18
        %v1096 = vpop.permute.xlu0 %1095
        %1097 = vrot.lane.b32.xlu0 %v942, 18
        %v1098 = vpop.permute.xlu0 %1097
        %1099 = vrot.lane.b32.xlu0 %v938, 18
        %v1100 = vpop.permute.xlu0 %1099
        %1101 = vrot.lane.b32.xlu0 %v944, 18
        %v1102 = vpop.permute.xlu0 %1101
        %v1103 = vsel %vm572, %v1096, %v1100
        %v1104 = vsel %vm572, %v1098, %v1102
        %v1105 = vsel %vm572, %v1100, %v1096
        %v1106 = vsel %vm572, %v1102, %v1098
        %s1107 = scalar_lea.vmem [#allocation7], 160
        %v1108 = vld [vmem:[%s1107] sm:$0xff]
        %v1109 = vld [vmem:[%s1107 + $0x8] sm:$0xff]
        %v1110 = vld [vmem:[%s1107 + $0x10] sm:$0xff]
        %v1111 = vld [vmem:[%s1107 + $0x18] sm:$0xff]
        %v1112 = vmul.f32 %v1105, %v1108
        %v1113 = vmul.f32 %v1103, %v1109
        %v1114 = vmul.f32 %v1106, %v1110
        %v1115 = vmul.f32 %v1104, %v1111
        %v1116 = vadd.f32 %v1091, %v1112
        %v1117 = vadd.f32 %v1092, %v1113
        %v1118 = vadd.f32 %v1093, %v1114
        %v1119 = vadd.f32 %v1094, %v1115
        %1120 = vrot.lane.b32.xlu0 %v936, 17
        %v1121 = vpop.permute.xlu0 %1120
        %1122 = vrot.lane.b32.xlu0 %v942, 17
        %v1123 = vpop.permute.xlu0 %1122
        %1124 = vrot.lane.b32.xlu0 %v938, 17
        %v1125 = vpop.permute.xlu0 %1124
        %1126 = vrot.lane.b32.xlu0 %v944, 17
        %v1127 = vpop.permute.xlu0 %1126
        %v1128 = vsel %vm586, %v1121, %v1125
        %v1129 = vsel %vm586, %v1123, %v1127
        %v1130 = vsel %vm586, %v1125, %v1121
        %v1131 = vsel %vm586, %v1127, %v1123
        %s1132 = scalar_lea.vmem [#allocation7], 192
        %v1133 = vld [vmem:[%s1132] sm:$0xff]
        %v1134 = vld [vmem:[%s1132 + $0x8] sm:$0xff]
        %v1135 = vld [vmem:[%s1132 + $0x10] sm:$0xff]
        %v1136 = vld [vmem:[%s1132 + $0x18] sm:$0xff]
        %v1137 = vmul.f32 %v1130, %v1133
        %v1138 = vmul.f32 %v1128, %v1134
        %v1139 = vmul.f32 %v1131, %v1135
        %v1140 = vmul.f32 %v1129, %v1136
        %v1141 = vadd.f32 %v1116, %v1137
        %v1142 = vadd.f32 %v1117, %v1138
        %v1143 = vadd.f32 %v1118, %v1139
        %v1144 = vadd.f32 %v1119, %v1140
        %1145 = vrot.lane.b32.xlu0 %v936, 16
        %v1146 = vpop.permute.xlu0 %1145
        %1147 = vrot.lane.b32.xlu0 %v942, 16
        %v1148 = vpop.permute.xlu0 %1147
        %1149 = vrot.lane.b32.xlu0 %v938, 16
        %v1150 = vpop.permute.xlu0 %1149
        %1151 = vrot.lane.b32.xlu0 %v944, 16
        %v1152 = vpop.permute.xlu0 %1151
        %v1153 = vsel %vm600, %v1146, %v1150
        %v1154 = vsel %vm600, %v1148, %v1152
        %v1155 = vsel %vm600, %v1150, %v1146
        %v1156 = vsel %vm600, %v1152, %v1148
        %s1157 = scalar_lea.vmem [#allocation7], 224
        %v1158 = vld [vmem:[%s1157] sm:$0xff]
        %v1159 = vld [vmem:[%s1157 + $0x8] sm:$0xff]
        %v1160 = vld [vmem:[%s1157 + $0x10] sm:$0xff]
        %v1161 = vld [vmem:[%s1157 + $0x18] sm:$0xff]
        %v1162 = vmul.f32 %v1155, %v1158
        %v1163 = vmul.f32 %v1153, %v1159
        %v1164 = vmul.f32 %v1156, %v1160
        %v1165 = vmul.f32 %v1154, %v1161
        %v1166 = vadd.f32 %v1141, %v1162
        %v1167 = vadd.f32 %v1142, %v1163
        %v1168 = vadd.f32 %v1143, %v1164
        %v1169 = vadd.f32 %v1144, %v1165
        %1170 = vrot.lane.b32.xlu0 %v936, 15
        %v1171 = vpop.permute.xlu0 %1170
        %1172 = vrot.lane.b32.xlu0 %v942, 15
        %v1173 = vpop.permute.xlu0 %1172
        %1174 = vrot.lane.b32.xlu0 %v938, 15
        %v1175 = vpop.permute.xlu0 %1174
        %1176 = vrot.lane.b32.xlu0 %v944, 15
        %v1177 = vpop.permute.xlu0 %1176
        %v1178 = vsel %vm614, %v1171, %v1175
        %v1179 = vsel %vm614, %v1173, %v1177
        %v1180 = vsel %vm614, %v1175, %v1171
        %v1181 = vsel %vm614, %v1177, %v1173
        %s1182 = scalar_lea.vmem [#allocation7], 256
        %v1183 = vld [vmem:[%s1182] sm:$0xff]
        %v1184 = vld [vmem:[%s1182 + $0x8] sm:$0xff]
        %v1185 = vld [vmem:[%s1182 + $0x10] sm:$0xff]
        %v1186 = vld [vmem:[%s1182 + $0x18] sm:$0xff]
        %v1187 = vmul.f32 %v1180, %v1183
        %v1188 = vmul.f32 %v1178, %v1184
        %v1189 = vmul.f32 %v1181, %v1185
        %v1190 = vmul.f32 %v1179, %v1186
        %v1191 = vadd.f32 %v1166, %v1187
        %v1192 = vadd.f32 %v1167, %v1188
        %v1193 = vadd.f32 %v1168, %v1189
        %v1194 = vadd.f32 %v1169, %v1190
        %1195 = vrot.lane.b32.xlu0 %v936, 14
        %v1196 = vpop.permute.xlu0 %1195
        %1197 = vrot.lane.b32.xlu0 %v942, 14
        %v1198 = vpop.permute.xlu0 %1197
        %1199 = vrot.lane.b32.xlu0 %v938, 14
        %v1200 = vpop.permute.xlu0 %1199
        %1201 = vrot.lane.b32.xlu0 %v944, 14
        %v1202 = vpop.permute.xlu0 %1201
        %v1203 = vsel %vm628, %v1196, %v1200
        %v1204 = vsel %vm628, %v1198, %v1202
        %v1205 = vsel %vm628, %v1200, %v1196
        %v1206 = vsel %vm628, %v1202, %v1198
        %s1207 = scalar_lea.vmem [#allocation7], 288
        %v1208 = vld [vmem:[%s1207] sm:$0xff]
        %v1209 = vld [vmem:[%s1207 + $0x8] sm:$0xff]
        %v1210 = vld [vmem:[%s1207 + $0x10] sm:$0xff]
        %v1211 = vld [vmem:[%s1207 + $0x18] sm:$0xff]
        %v1212 = vmul.f32 %v1205, %v1208
        %v1213 = vmul.f32 %v1203, %v1209
        %v1214 = vmul.f32 %v1206, %v1210
        %v1215 = vmul.f32 %v1204, %v1211
        %v1216 = vadd.f32 %v1191, %v1212
        %v1217 = vadd.f32 %v1192, %v1213
        %v1218 = vadd.f32 %v1193, %v1214
        %v1219 = vadd.f32 %v1194, %v1215
        %1220 = vrot.lane.b32.xlu0 %v936, 2
        %v1221 = vpop.permute.xlu0 %1220
        %1222 = vrot.lane.b32.xlu0 %v942, 2
        %v1223 = vpop.permute.xlu0 %1222
        %1224 = vrot.lane.b32.xlu0 %v938, 2
        %v1225 = vpop.permute.xlu0 %1224
        %1226 = vrot.lane.b32.xlu0 %v944, 2
        %v1227 = vpop.permute.xlu0 %1226
        %v1228 = vsel %vm642, %v1221, %v1225
        %v1229 = vsel %vm642, %v1223, %v1227
        %v1230 = vsel %vm642, %v1225, %v1221
        %v1231 = vsel %vm642, %v1227, %v1223
        %s1232 = scalar_lea.vmem [#allocation7], 320
        %v1233 = vld [vmem:[%s1232] sm:$0xff]
        %v1234 = vld [vmem:[%s1232 + $0x8] sm:$0xff]
        %v1235 = vld [vmem:[%s1232 + $0x10] sm:$0xff]
        %v1236 = vld [vmem:[%s1232 + $0x18] sm:$0xff]
        %v1237 = vmul.f32 %v1230, %v1233
        %v1238 = vmul.f32 %v1228, %v1234
        %v1239 = vmul.f32 %v1231, %v1235
        %v1240 = vmul.f32 %v1229, %v1236
        %v1241 = vadd.f32 %v1216, %v1237
        %v1242 = vadd.f32 %v1217, %v1238
        %v1243 = vadd.f32 %v1218, %v1239
        %v1244 = vadd.f32 %v1219, %v1240
        %1245 = vrot.lane.b32.xlu0 %v936, 1
        %v1246 = vpop.permute.xlu0 %1245
        %1247 = vrot.lane.b32.xlu0 %v942, 1
        %v1248 = vpop.permute.xlu0 %1247
        %1249 = vrot.lane.b32.xlu0 %v938, 1
        %v1250 = vpop.permute.xlu0 %1249
        %1251 = vrot.lane.b32.xlu0 %v944, 1
        %v1252 = vpop.permute.xlu0 %1251
        %v1253 = vsel %vm656, %v1246, %v1250
        %v1254 = vsel %vm656, %v1248, %v1252
        %v1255 = vsel %vm656, %v1250, %v1246
        %v1256 = vsel %vm656, %v1252, %v1248
        %s1257 = scalar_lea.vmem [#allocation7], 352
        %v1258 = vld [vmem:[%s1257] sm:$0xff]
        %v1259 = vld [vmem:[%s1257 + $0x8] sm:$0xff]
        %v1260 = vld [vmem:[%s1257 + $0x10] sm:$0xff]
        %v1261 = vld [vmem:[%s1257 + $0x18] sm:$0xff]
        %v1262 = vmul.f32 %v1255, %v1258
        %v1263 = vmul.f32 %v1253, %v1259
        %v1264 = vmul.f32 %v1256, %v1260
        %v1265 = vmul.f32 %v1254, %v1261
        %v1266 = vadd.f32 %v1241, %v1262
        %v1267 = vadd.f32 %v1242, %v1263
        %v1268 = vadd.f32 %v1243, %v1264
        %v1269 = vadd.f32 %v1244, %v1265
        %1270 = vrot.lane.b32.xlu0 %v936, 127
        %v1271 = vpop.permute.xlu0 %1270
        %1272 = vrot.lane.b32.xlu0 %v942, 127
        %v1273 = vpop.permute.xlu0 %1272
        %1274 = vrot.lane.b32.xlu0 %v938, 127
        %v1275 = vpop.permute.xlu0 %1274
        %1276 = vrot.lane.b32.xlu0 %v944, 127
        %v1277 = vpop.permute.xlu0 %1276
        %v1278 = vsel %vm670, %v1271, %v1275
        %v1279 = vsel %vm670, %v1273, %v1277
        %v1280 = vsel %vm670, %v1275, %v1271
        %v1281 = vsel %vm670, %v1277, %v1273
        %s1282 = scalar_lea.vmem [#allocation7], 416
        %v1283 = vld [vmem:[%s1282] sm:$0xff]
        %v1284 = vld [vmem:[%s1282 + $0x8] sm:$0xff]
        %v1285 = vld [vmem:[%s1282 + $0x10] sm:$0xff]
        %v1286 = vld [vmem:[%s1282 + $0x18] sm:$0xff]
        %v1287 = vmul.f32 %v1278, %v1283
        %v1288 = vmul.f32 %v1280, %v1284
        %v1289 = vmul.f32 %v1279, %v1285
        %v1290 = vmul.f32 %v1281, %v1286
        %v1291 = vadd.f32 %v1266, %v1287
        %v1292 = vadd.f32 %v1267, %v1288
        %v1293 = vadd.f32 %v1268, %v1289
        %v1294 = vadd.f32 %v1269, %v1290
        %1295 = vrot.lane.b32.xlu0 %v936, 126
        %v1296 = vpop.permute.xlu0 %1295
        %1297 = vrot.lane.b32.xlu0 %v942, 126
        %v1298 = vpop.permute.xlu0 %1297
        %1299 = vrot.lane.b32.xlu0 %v938, 126
        %v1300 = vpop.permute.xlu0 %1299
        %1301 = vrot.lane.b32.xlu0 %v944, 126
        %v1302 = vpop.permute.xlu0 %1301
        %v1303 = vsel %vm684, %v1296, %v1300
        %v1304 = vsel %vm684, %v1298, %v1302
        %v1305 = vsel %vm684, %v1300, %v1296
        %v1306 = vsel %vm684, %v1302, %v1298
        %s1307 = scalar_lea.vmem [#allocation7], 448
        %v1308 = vld [vmem:[%s1307] sm:$0xff]
        %v1309 = vld [vmem:[%s1307 + $0x8] sm:$0xff]
        %v1310 = vld [vmem:[%s1307 + $0x10] sm:$0xff]
        %v1311 = vld [vmem:[%s1307 + $0x18] sm:$0xff]
        %v1312 = vmul.f32 %v1303, %v1308
        %v1313 = vmul.f32 %v1305, %v1309
        %v1314 = vmul.f32 %v1304, %v1310
        %v1315 = vmul.f32 %v1306, %v1311
        %v1316 = vadd.f32 %v1291, %v1312
        %v1317 = vadd.f32 %v1292, %v1313
        %v1318 = vadd.f32 %v1293, %v1314
        %v1319 = vadd.f32 %v1294, %v1315
        %1320 = vrot.lane.b32.xlu0 %v936, 114
        %v1321 = vpop.permute.xlu0 %1320
        %1322 = vrot.lane.b32.xlu0 %v942, 114
        %v1323 = vpop.permute.xlu0 %1322
        %1324 = vrot.lane.b32.xlu0 %v938, 114
        %v1325 = vpop.permute.xlu0 %1324
        %1326 = vrot.lane.b32.xlu0 %v944, 114
        %v1327 = vpop.permute.xlu0 %1326
        %v1328 = vsel %vm698, %v1321, %v1325
        %v1329 = vsel %vm698, %v1323, %v1327
        %v1330 = vsel %vm698, %v1325, %v1321
        %v1331 = vsel %vm698, %v1327, %v1323
        %s1332 = scalar_lea.vmem [#allocation7], 480
        %v1333 = vld [vmem:[%s1332] sm:$0xff]
        %v1334 = vld [vmem:[%s1332 + $0x8] sm:$0xff]
        %v1335 = vld [vmem:[%s1332 + $0x10] sm:$0xff]
        %v1336 = vld [vmem:[%s1332 + $0x18] sm:$0xff]
        %v1337 = vmul.f32 %v1328, %v1333
        %v1338 = vmul.f32 %v1330, %v1334
        %v1339 = vmul.f32 %v1329, %v1335
        %v1340 = vmul.f32 %v1331, %v1336
        %v1341 = vadd.f32 %v1316, %v1337
        %v1342 = vadd.f32 %v1317, %v1338
        %v1343 = vadd.f32 %v1318, %v1339
        %v1344 = vadd.f32 %v1319, %v1340
        %1345 = vrot.lane.b32.xlu0 %v936, 113
        %v1346 = vpop.permute.xlu0 %1345
        %1347 = vrot.lane.b32.xlu0 %v942, 113
        %v1348 = vpop.permute.xlu0 %1347
        %1349 = vrot.lane.b32.xlu0 %v938, 113
        %v1350 = vpop.permute.xlu0 %1349
        %1351 = vrot.lane.b32.xlu0 %v944, 113
        %v1352 = vpop.permute.xlu0 %1351
        %v1353 = vsel %vm712, %v1346, %v1350
        %v1354 = vsel %vm712, %v1348, %v1352
        %v1355 = vsel %vm712, %v1350, %v1346
        %v1356 = vsel %vm712, %v1352, %v1348
        %s1357 = scalar_lea.vmem [#allocation7], 512
        %v1358 = vld [vmem:[%s1357] sm:$0xff]
        %v1359 = vld [vmem:[%s1357 + $0x8] sm:$0xff]
        %v1360 = vld [vmem:[%s1357 + $0x10] sm:$0xff]
        %v1361 = vld [vmem:[%s1357 + $0x18] sm:$0xff]
        %v1362 = vmul.f32 %v1353, %v1358
        %v1363 = vmul.f32 %v1355, %v1359
        %v1364 = vmul.f32 %v1354, %v1360
        %v1365 = vmul.f32 %v1356, %v1361
        %v1366 = vadd.f32 %v1341, %v1362
        %v1367 = vadd.f32 %v1342, %v1363
        %v1368 = vadd.f32 %v1343, %v1364
        %v1369 = vadd.f32 %v1344, %v1365
        %1370 = vrot.lane.b32.xlu0 %v936, 112
        %v1371 = vpop.permute.xlu0 %1370
        %1372 = vrot.lane.b32.xlu0 %v942, 112
        %v1373 = vpop.permute.xlu0 %1372
        %1374 = vrot.lane.b32.xlu0 %v938, 112
        %v1375 = vpop.permute.xlu0 %1374
        %1376 = vrot.lane.b32.xlu0 %v944, 112
        %v1377 = vpop.permute.xlu0 %1376
        %v1378 = vsel %vm726, %v1371, %v1375
        %v1379 = vsel %vm726, %v1373, %v1377
        %v1380 = vsel %vm726, %v1375, %v1371
        %v1381 = vsel %vm726, %v1377, %v1373
        %s1382 = scalar_lea.vmem [#allocation7], 544
        %v1383 = vld [vmem:[%s1382] sm:$0xff]
        %v1384 = vld [vmem:[%s1382 + $0x8] sm:$0xff]
        %v1385 = vld [vmem:[%s1382 + $0x10] sm:$0xff]
        %v1386 = vld [vmem:[%s1382 + $0x18] sm:$0xff]
        %v1387 = vmul.f32 %v1378, %v1383
        %v1388 = vmul.f32 %v1380, %v1384
        %v1389 = vmul.f32 %v1379, %v1385
        %v1390 = vmul.f32 %v1381, %v1386
        %v1391 = vadd.f32 %v1366, %v1387
        %v1392 = vadd.f32 %v1367, %v1388
        %v1393 = vadd.f32 %v1368, %v1389
        %v1394 = vadd.f32 %v1369, %v1390
        %1395 = vrot.lane.b32.xlu0 %v936, 111
        %v1396 = vpop.permute.xlu0 %1395
        %1397 = vrot.lane.b32.xlu0 %v942, 111
        %v1398 = vpop.permute.xlu0 %1397
        %1399 = vrot.lane.b32.xlu0 %v938, 111
        %v1400 = vpop.permute.xlu0 %1399
        %1401 = vrot.lane.b32.xlu0 %v944, 111
        %v1402 = vpop.permute.xlu0 %1401
        %v1403 = vsel %vm740, %v1396, %v1400
        %v1404 = vsel %vm740, %v1398, %v1402
        %v1405 = vsel %vm740, %v1400, %v1396
        %v1406 = vsel %vm740, %v1402, %v1398
        %s1407 = scalar_lea.vmem [#allocation7], 576
        %v1408 = vld [vmem:[%s1407] sm:$0xff]
        %v1409 = vld [vmem:[%s1407 + $0x8] sm:$0xff]
        %v1410 = vld [vmem:[%s1407 + $0x10] sm:$0xff]
        %v1411 = vld [vmem:[%s1407 + $0x18] sm:$0xff]
        %v1412 = vmul.f32 %v1403, %v1408
        %v1413 = vmul.f32 %v1405, %v1409
        %v1414 = vmul.f32 %v1404, %v1410
        %v1415 = vmul.f32 %v1406, %v1411
        %v1416 = vadd.f32 %v1391, %v1412
        %v1417 = vadd.f32 %v1392, %v1413
        %v1418 = vadd.f32 %v1393, %v1414
        %v1419 = vadd.f32 %v1394, %v1415
        %1420 = vrot.lane.b32.xlu0 %v936, 110
        %v1421 = vpop.permute.xlu0 %1420
        %1422 = vrot.lane.b32.xlu0 %v942, 110
        %v1423 = vpop.permute.xlu0 %1422
        %1424 = vrot.lane.b32.xlu0 %v938, 110
        %v1425 = vpop.permute.xlu0 %1424
        %1426 = vrot.lane.b32.xlu0 %v944, 110
        %v1427 = vpop.permute.xlu0 %1426
        %v1428 = vsel %vm754, %v1421, %v1425
        %v1429 = vsel %vm754, %v1423, %v1427
        %v1430 = vsel %vm754, %v1425, %v1421
        %v1431 = vsel %vm754, %v1427, %v1423
        %s1432 = scalar_lea.vmem [#allocation7], 608
        %v1433 = vld [vmem:[%s1432] sm:$0xff]
        %v1434 = vld [vmem:[%s1432 + $0x8] sm:$0xff]
        %v1435 = vld [vmem:[%s1432 + $0x10] sm:$0xff]
        %v1436 = vld [vmem:[%s1432 + $0x18] sm:$0xff]
        %v1437 = vmul.f32 %v1428, %v1433
        %v1438 = vmul.f32 %v1430, %v1434
        %v1439 = vmul.f32 %v1429, %v1435
        %v1440 = vmul.f32 %v1431, %v1436
        %v1441 = vadd.f32 %v1416, %v1437
        %v1442 = vadd.f32 %v1417, %v1438
        %v1443 = vadd.f32 %v1418, %v1439
        %v1444 = vadd.f32 %v1419, %v1440
        %1445 = vrot.lane.b32.xlu0 %v936, 98
        %v1446 = vpop.permute.xlu0 %1445
        %1447 = vrot.lane.b32.xlu0 %v942, 98
        %v1448 = vpop.permute.xlu0 %1447
        %1449 = vrot.lane.b32.xlu0 %v938, 98
        %v1450 = vpop.permute.xlu0 %1449
        %1451 = vrot.lane.b32.xlu0 %v944, 98
        %v1452 = vpop.permute.xlu0 %1451
        %v1453 = vsel %vm768, %v1446, %v1450
        %v1454 = vsel %vm768, %v1448, %v1452
        %v1455 = vsel %vm768, %v1450, %v1446
        %v1456 = vsel %vm768, %v1452, %v1448
        %s1457 = scalar_lea.vmem [#allocation7], 640
        %v1458 = vld [vmem:[%s1457] sm:$0xff]
        %v1459 = vld [vmem:[%s1457 + $0x8] sm:$0xff]
        %v1460 = vld [vmem:[%s1457 + $0x10] sm:$0xff]
        %v1461 = vld [vmem:[%s1457 + $0x18] sm:$0xff]
        %v1462 = vmul.f32 %v1453, %v1458
        %v1463 = vmul.f32 %v1455, %v1459
        %v1464 = vmul.f32 %v1454, %v1460
        %v1465 = vmul.f32 %v1456, %v1461
        %v1466 = vadd.f32 %v1441, %v1462
        %v1467 = vadd.f32 %v1442, %v1463
        %v1468 = vadd.f32 %v1443, %v1464
        %v1469 = vadd.f32 %v1444, %v1465
        %1470 = vrot.lane.b32.xlu0 %v936, 97
        %v1471 = vpop.permute.xlu0 %1470
        %1472 = vrot.lane.b32.xlu0 %v942, 97
        %v1473 = vpop.permute.xlu0 %1472
        %1474 = vrot.lane.b32.xlu0 %v938, 97
        %v1475 = vpop.permute.xlu0 %1474
        %1476 = vrot.lane.b32.xlu0 %v944, 97
        %v1477 = vpop.permute.xlu0 %1476
        %v1478 = vsel %vm782, %v1471, %v1475
        %v1479 = vsel %vm782, %v1473, %v1477
        %v1480 = vsel %vm782, %v1475, %v1471
        %v1481 = vsel %vm782, %v1477, %v1473
        %s1482 = scalar_lea.vmem [#allocation7], 672
        %v1483 = vld [vmem:[%s1482] sm:$0xff]
        %v1484 = vld [vmem:[%s1482 + $0x8] sm:$0xff]
        %v1485 = vld [vmem:[%s1482 + $0x10] sm:$0xff]
        %v1486 = vld [vmem:[%s1482 + $0x18] sm:$0xff]
        %v1487 = vmul.f32 %v1478, %v1483
        %v1488 = vmul.f32 %v1480, %v1484
        %v1489 = vmul.f32 %v1479, %v1485
        %v1490 = vmul.f32 %v1481, %v1486
        %v1491 = vadd.f32 %v1466, %v1487
        %v1492 = vadd.f32 %v1467, %v1488
        %v1493 = vadd.f32 %v1468, %v1489
        %v1494 = vadd.f32 %v1469, %v1490
        %1495 = vrot.lane.b32.xlu0 %v936, 96
        %v1496 = vpop.permute.xlu0 %1495
        %1497 = vrot.lane.b32.xlu0 %v942, 96
        %v1498 = vpop.permute.xlu0 %1497
        %1499 = vrot.lane.b32.xlu0 %v938, 96
        %v1500 = vpop.permute.xlu0 %1499
        %1501 = vrot.lane.b32.xlu0 %v944, 96
        %v1502 = vpop.permute.xlu0 %1501
        %v1503 = vsel %vm796, %v1496, %v1500
        %v1504 = vsel %vm796, %v1498, %v1502
        %v1505 = vsel %vm796, %v1500, %v1496
        %v1506 = vsel %vm796, %v1502, %v1498
        %s1507 = scalar_lea.vmem [#allocation7], 704
        %v1508 = vld [vmem:[%s1507] sm:$0xff]
        %v1509 = vld [vmem:[%s1507 + $0x8] sm:$0xff]
        %v1510 = vld [vmem:[%s1507 + $0x10] sm:$0xff]
        %v1511 = vld [vmem:[%s1507 + $0x18] sm:$0xff]
        %v1512 = vmul.f32 %v1503, %v1508
        %v1513 = vmul.f32 %v1505, %v1509
        %v1514 = vmul.f32 %v1504, %v1510
        %v1515 = vmul.f32 %v1506, %v1511
        %v1516 = vadd.f32 %v1491, %v1512
        %v1517 = vadd.f32 %v1492, %v1513
        %v1518 = vadd.f32 %v1493, %v1514
        %v1519 = vadd.f32 %v1494, %v1515
        %1520 = vrot.lane.b32.xlu0 %v936, 95
        %v1521 = vpop.permute.xlu0 %1520
        %1522 = vrot.lane.b32.xlu0 %v942, 95
        %v1523 = vpop.permute.xlu0 %1522
        %1524 = vrot.lane.b32.xlu0 %v938, 95
        %v1525 = vpop.permute.xlu0 %1524
        %1526 = vrot.lane.b32.xlu0 %v944, 95
        %v1527 = vpop.permute.xlu0 %1526
        %v1528 = vsel %vm810, %v1521, %v1525
        %v1529 = vsel %vm810, %v1523, %v1527
        %v1530 = vsel %vm810, %v1525, %v1521
        %v1531 = vsel %vm810, %v1527, %v1523
        %s1532 = scalar_lea.vmem [#allocation7], 736
        %v1533 = vld [vmem:[%s1532] sm:$0xff]
        %v1534 = vld [vmem:[%s1532 + $0x8] sm:$0xff]
        %v1535 = vld [vmem:[%s1532 + $0x10] sm:$0xff]
        %v1536 = vld [vmem:[%s1532 + $0x18] sm:$0xff]
        %v1537 = vmul.f32 %v1528, %v1533
        %v1538 = vmul.f32 %v1530, %v1534
        %v1539 = vmul.f32 %v1529, %v1535
        %v1540 = vmul.f32 %v1531, %v1536
        %v1541 = vadd.f32 %v1516, %v1537
        %v1542 = vadd.f32 %v1517, %v1538
        %v1543 = vadd.f32 %v1518, %v1539
        %v1544 = vadd.f32 %v1519, %v1540
        %1545 = vrot.lane.b32.xlu0 %v936, 94
        %v1546 = vpop.permute.xlu0 %1545
        %1547 = vrot.lane.b32.xlu0 %v942, 94
        %v1548 = vpop.permute.xlu0 %1547
        %1549 = vrot.lane.b32.xlu0 %v938, 94
        %v1550 = vpop.permute.xlu0 %1549
        %1551 = vrot.lane.b32.xlu0 %v944, 94
        %v1552 = vpop.permute.xlu0 %1551
        %v1553 = vsel %vm824, %v1546, %v1550
        %v1554 = vsel %vm824, %v1548, %v1552
        %v1555 = vsel %vm824, %v1550, %v1546
        %v1556 = vsel %vm824, %v1552, %v1548
        %s1557 = scalar_lea.vmem [#allocation7], 768
        %v1558 = vld [vmem:[%s1557] sm:$0xff]
        %v1559 = vld [vmem:[%s1557 + $0x8] sm:$0xff]
        %v1560 = vld [vmem:[%s1557 + $0x10] sm:$0xff]
        %v1561 = vld [vmem:[%s1557 + $0x18] sm:$0xff]
        %v1562 = vmul.f32 %v1553, %v1558
        %v1563 = vmul.f32 %v1555, %v1559
        %v1564 = vmul.f32 %v1554, %v1560
        %v1565 = vmul.f32 %v1556, %v1561
        %v1566 = vadd.f32 %v1541, %v1562
        %v1567 = vadd.f32 %v1542, %v1563
        %v1568 = vadd.f32 %v1543, %v1564
        %v1569 = vadd.f32 %v1544, %v1565
        %v1570 = vadd.f32 %v936, %v380
        %v1571 = vadd.f32 %v938, %v381
        %v1572 = vadd.f32 %v942, %v382
        %v1573 = vadd.f32 %v944, %v383
        %1574 = vst [vmem:[%s379] sm:$0xff] %v1570
        %1575 = vst [vmem:[%s379 + $0x8] sm:$0xff] %v1571
        %1576 = vst [vmem:[%s379 + $0x10] sm:$0xff] %v1572
        %1577 = vst [vmem:[%s379 + $0x18] sm:$0xff] %v1573
        %v1578 = vadd.f32 %v1566, %v384
        %v1579 = vadd.f32 %v1567, %v385
        %v1580 = vadd.f32 %v1568, %v386
        %v1581 = vadd.f32 %v1569, %v387
        %1582 = vst [vmem:[%s379 + $0x20] sm:$0xff] %v1578
        %1583 = vst [vmem:[%s379 + $0x28] sm:$0xff] %v1579
        %1584 = vst [vmem:[%s379 + $0x30] sm:$0xff] %v1580
        %1585 = vst [vmem:[%s379 + $0x38] sm:$0xff] %v1581
        %s1586 = sand.u32 %s229, 1
        %s1587 = scalar_lea.sflag [#allocation4], %s1586
        %s1588 = sand.u32 %s229, 1
        %s1589 = smul.addr %s1588, 64
        %s1590 = scalar_lea.vmem [#allocation8], %s1589
        // Predicated region
        $region69: #{tpu_custom_call.1} parent=55 // pred_check
          %p1591 = pneg %p239
        $region70: #{tpu_custom_call.1} parent=55 // pred_check_branch
          %1593 = sbr.rel (%p1591) target = $region72
        $region71: #{tpu_custom_call.1} parent=55 // pred_region
          %s1595 = ssub.s32 1024, 1024
          %1596 = vsyncadd %s1587, %s1595
          %s1597 = smul.addr %s27, 8
          %s1598 = smul.addr %s1597, 128
          %s1599 = scalar_lea.hbm %s9, %s1598
          %s1600 = sshll.u32 %s1590, 4
          %s1601 = int_to_ptr.vmem [resolvable:$true] %s1600
          %1606 = dma.vmem_to_hbm [thread:$0]  %s1601, 1024, %s1599, %s1587, 256, 256, 16
        $region72: #{tpu_custom_call.1} parent=55 // pred_fallthru
          _
      $region56: #{tpu_custom_call.1} parent=5 // pred_fallthru
        _
      %p1607 = scmp.le.s32.totalorder 2, %s22
      // Predicated region
      $region73: #{tpu_custom_call.1} parent=5 // pred_check
        %p1608 = pneg %p1607
      $region74: #{tpu_custom_call.1} parent=5 // pred_check_branch
        %1610 = sbr.rel (%p1608) target = $region76
      $region75: #{tpu_custom_call.1} parent=5 // pred_region
        %s1611 = ssub.s32 %s22, 2
        // Predicated region
        $region77: #{tpu_custom_call.1} parent=75 // pred_check
          %p1612 = pneg %p245
        $region78: #{tpu_custom_call.1} parent=75 // pred_check_branch
          %1614 = sbr.rel (%p1612) target = $region80
        $region79: #{tpu_custom_call.1} parent=75 // pred_region
          %s1615 = sand.u32 %s230, 1
          %s1616 = scalar_lea.sflag [#allocation4], %s1615
          %s1617 = sand.u32 %s230, 1
          %s1618 = smul.addr %s1617, 64
          %s1619 = scalar_lea.vmem [#allocation8], %s1618
          %1620 = dma.done %s1616, 1024
        $region80: #{tpu_custom_call.1} parent=75 // pred_fallthru
          _
      $region76: #{tpu_custom_call.1} parent=5 // pred_fallthru
        _
    $region6: #{tpu_custom_call.1} parent=1 // loop_footer
      %s26 = sadd.s32 1, %s22
    $region7: #{tpu_custom_call.1} parent=1 // loop_footer_branch
      %21 = sbr.rel target = $region3
    $region8: #{tpu_custom_call.1} parent=1 // loop_exit
      _
    %1621 = vsyncpa [#allocation3], 1
    %s1622 = scalar_lea.sflag [#allocation3], 1
    %1623 = vsyncpa %s1622, 1
    %1624 = vsyncpa [#allocation6], 1
    %1625 = vsyncpa [#allocation4], 1
    %s1626 = scalar_lea.sflag [#allocation4], 1
    %1627 = vsyncpa %s1626, 1

</llo_original>
